<compile_context>
chip_gen: v7x
topology: tpu7x:2x2x1
jax: 0.10.0
libtpu: 0.0.40
codegen_flags: <defaults>
</compile_context>

<pallas_src>
import jax
import jax.numpy as jnp
from jax import lax
from jax.experimental import pallas as pl
from jax.experimental.pallas import tpu as pltpu

B = 2          # batch
L_IN = 66      # input length: conv/pool chain -> 32 -> 15, 32*15 = 480 = fc1 in
OUT_DIM = 7    # real fc2 width
OUT_PAD = 128  # lane-dense padded fc2 width written by the kernel


def cnn_kernel(xs_ref, w1t_ref, b1_ref, w2f_ref, b2_ref,
               fw1_ref, fb1_ref, fw2_ref, fb2_ref, out_ref):
    xs = xs_ref[...]                                   # (B, 66) single input channel
    b = xs.shape[0]

    # ---- conv1: Conv1d(1, 16, k=3, s=1, p=1) + ReLU  (VPU broadcast FMAs) ----
    zcol = jnp.zeros((b, 1), xs.dtype)
    x_m1 = jnp.concatenate([zcol, xs[:, :-1]], axis=1)   # tap k=0 (t-1)
    x_p1 = jnp.concatenate([xs[:, 1:], zcol], axis=1)    # tap k=2 (t+1)
    w1 = w1t_ref[...]                                    # (3, 16): w1[k, cout]
    out1 = (x_m1[:, :, None] * w1[0][None, None, :]
            + xs[:, :, None] * w1[1][None, None, :]
            + x_p1[:, :, None] * w1[2][None, None, :]
            + b1_ref[0][None, None, :])                  # (B, 66, 16)
    out1 = jnp.maximum(out1, 0.0)

    # ---- MaxPool1d(kernel=4, stride=2): 66 -> 32 -----------------------------
    # Window-4/stride-2 via pairwise max + overlapping max (stride-2 selection
    # needs either this reshape or a strided value slice; reshape form is the
    # proven-correct one).
    r1 = out1.reshape(b, 33, 2, 16)
    m1 = jnp.maximum(r1[:, :, 0, :], r1[:, :, 1, :])     # (B, 33, 16)
    p1 = jnp.maximum(m1[:, :32, :], m1[:, 1:33, :])      # (B, 32, 16)

    # ---- conv2: Conv1d(16, 32, k=3, s=1, p=1) + ReLU -------------------------
    # Fused into a single MXU matmul: taps concatenated along channels (k-major,
    # matching the row order of w2f = transpose(w2,(2,1,0)).reshape(48,32)) and
    # batch collapsed into the M dimension -> (B*32, 48) @ (48, 32).
    zrow = jnp.zeros((b, 1, 16), p1.dtype)
    p1_pad = jnp.concatenate([zrow, p1, zrow], axis=1)   # (B, 34, 16), zero 'same' pad
    taps = jnp.concatenate(
        [p1_pad[:, 0:32, :],     # k=0: p1[t-1]
         p1_pad[:, 1:33, :],     # k=1: p1[t]
         p1_pad[:, 2:34, :]],    # k=2: p1[t+1]
        axis=2)                                           # (B, 32, 48)
    taps2d = taps.reshape(b * 32, 48)                     # layout-preserving merge
    out2 = jnp.dot(taps2d, w2f_ref[...],
                   preferred_element_type=jnp.float32)    # (B*32, 32)
    out2 = jnp.maximum(out2.reshape(b, 32, 32) + b2_ref[0][None, None, :], 0.0)

    # ---- MaxPool1d(kernel=4, stride=2): 32 -> 15 -----------------------------
    r2 = out2.reshape(b, 16, 2, 32)
    m2 = jnp.maximum(r2[:, :, 0, :], r2[:, :, 1, :])      # (B, 16, 32)
    p2 = jnp.maximum(m2[:, :15, :], m2[:, 1:16, :])       # (B, 15, 32)

    # ---- flatten (L-major, C-minor; fc1 columns pre-permuted to match — see
    # prepare_params: kernel index j = l*32 + c <-> torch index c*15 + l) ------
    flat = p2.reshape(b, 480)

    # ---- fn1: Linear(480, 128) + ReLU ----------------------------------------
    h = jnp.dot(flat, fw1_ref[...],
                preferred_element_type=jnp.float32) + fb1_ref[0][None, :]
    h = jnp.maximum(h, 0.0)

    # ---- fn2: Linear(480->7 padded to 128 lanes) + Sigmoid -------------------
    z = jnp.dot(h, fw2_ref[...],
                preferred_element_type=jnp.float32) + fb2_ref[0][None, :]
    # sigmoid(z) = 0.5*(tanh(z/2)+1): one EUP transcendental, no VPU divide,
    # no exp overflow.  Padding lanes (z=0) give 0.5 and are sliced off outside.
    out_ref[...] = 0.5 * jnp.tanh(0.5 * z) + 0.5          # (B, 128) lane-dense store


def prepare_params(params):
    """One-time weight preprocessing (hoisted out of the per-call path).

    Returns device arrays already in the layouts the kernel consumes, so the
    per-call work is just the pallas_call (weights stay resident on device; in
    a serving loop the ~250 KB fc1 weight DMA could further be hidden with a
    cross-call prefetch, see review item 10).
    """
    w1, b1, w2, b2, fw1, fb1, fw2, fb2 = (params[k] for k in
                                          ("w1", "b1", "w2", "b2", "fw1", "fb1", "fw2", "fb2"))
    # conv weights -> tap-major, channels-last
    w1t = jnp.transpose(w1[:, 0, :], (1, 0))              # (3, 16): [k, cout]
    w2f = jnp.transpose(w2, (2, 1, 0)).reshape(48, 32)    # rows = k*16 + cin

    # fc1 column permutation: ties the kernel's (L-major, C-minor) flatten of the
    # (B, 15, 32) pooled activations to PyTorch's (C-major, L-minor) x.view(B,-1):
    #   kernel flat index j = l*32 + c   <->   torch index c*15 + l
    j = jnp.arange(480)
    torch_idx = (j % 32) * 15 + (j // 32)
    fw1p = jnp.transpose(fw1[:, torch_idx], (1, 0))       # (480, 128)

    # fc2 padded to 128 output lanes (lane-dense kernel store); cols 7.. are zero.
    fw2p = jnp.zeros((OUT_PAD, OUT_PAD), jnp.float32).at[:, :OUT_DIM].set(
        jnp.transpose(fw2, (1, 0)))
    fb2p = jnp.zeros((OUT_PAD,), jnp.float32).at[:OUT_DIM].set(fb2)

    return {
        "w1t": w1t, "b1": b1.reshape(1, 16),
        "w2f": w2f, "b2": b2.reshape(1, 32),
        "fw1p": fw1p, "fb1": fb1.reshape(1, 128),
        "fw2p": fw2p, "fb2p": fb2p.reshape(1, OUT_PAD),
    }


def cnn_forward(x, prep):
    """x: (B, 1, 66) NCL float32; prep: output of prepare_params (call once)."""
    xs = x[:, 0, :]                                       # (B, 66)
    args = (xs, prep["w1t"], prep["b1"], prep["w2f"], prep["b2"],
            prep["fw1p"], prep["fb1"], prep["fw2p"], prep["fb2p"])
    vmem = pl.BlockSpec(memory_space=pltpu.MemorySpace.VMEM)
    # Single invocation, no grid: total live data < 0.5 MB.  For batches beyond
    # a few samples, switch to grid=(B//bt,) + dimension_semantics=("parallel",)
    # so v7x's second TensorCore is used (size tiles for 64 MiB VMEM there).
    out = pl.pallas_call(
        cnn_kernel,
        out_shape=jax.ShapeDtypeStruct((x.shape[0], OUT_PAD), jnp.float32),
        in_specs=[vmem] * len(args),
        out_specs=vmem,
    )(*args)
    return out[:, :OUT_DIM]


def cnn_reference(x, params):
    """Pure-JAX reference following PyTorch NCL semantics exactly."""
    w1, b1, w2, b2, fw1, fb1, fw2, fb2 = (params[k] for k in
                                          ("w1", "b1", "w2", "b2", "fw1", "fb1", "fw2", "fb2"))
    dn = ('NCH', 'OIH', 'NCH')

    def maxpool(v):  # kernel 4, stride 2, no padding
        return lax.reduce_window(v, -jnp.inf, lax.max, (1, 1, 4), (1, 1, 2), 'VALID')

    h = lax.conv_general_dilated(x, w1, (1,), ((1, 1),), dimension_numbers=dn)
    h = jnp.maximum(h + b1[None, :, None], 0.0)
    h = maxpool(h)
    h = lax.conv_general_dilated(h, w2, (1,), ((1, 1),), dimension_numbers=dn)
    h = jnp.maximum(h + b2[None, :, None], 0.0)
    h = maxpool(h)
    flat = h.reshape(h.shape[0], -1)                      # (B, 480), torch ordering
    h1 = jnp.maximum(flat @ fw1.T + fb1, 0.0)
    return jax.nn.sigmoid(h1 @ fw2.T + fb2)


def init_params(key):
    ks = jax.random.split(key, 8)
    s = 0.1
    return {
        "w1": jax.random.normal(ks[0], (16, 1, 3), jnp.float32) * s,
        "b1": jax.random.normal(ks[1], (16,), jnp.float32) * s,
        "w2": jax.random.normal(ks[2], (32, 16, 3), jnp.float32) * s,
        "b2": jax.random.normal(ks[3], (32,), jnp.float32) * s,
        "fw1": jax.random.normal(ks[4], (128, 480), jnp.float32) * s,
        "fb1": jax.random.normal(ks[5], (128,), jnp.float32) * s,
        "fw2": jax.random.normal(ks[6], (7, 128), jnp.float32) * s,
        "fb2": jax.random.normal(ks[7], (7,), jnp.float32) * s,
    }


if __name__ == "__main__":
    key = jax.random.PRNGKey(0)
    kx, kp = jax.random.split(key)
    x = jax.random.normal(kx, (B, 1, L_IN), jnp.float32)
    params = init_params(kp)

    # One-time preprocessing (hoisted out of the hot path), then jit the forward.
    prep = jax.block_until_ready(prepare_params(params))
    fwd = jax.jit(cnn_forward)

    out = jax.block_until_ready(fwd(x, prep))
    ref = jax.block_until_ready(cnn_reference(x, params))

    assert out.shape == (B, OUT_DIM), out.shape
    assert jnp.allclose(out, ref, atol=1e-4, rtol=1e-4), (out, ref)
    print("KERNEL_OK")
</pallas_src>

<mosaic_0001>
module attributes {stable_mosaic.version = 11 : i64} {
  func.func @cnn_kernel(%arg0: memref<2x66xf32, #tpu.memory_space<vmem>>, %arg1: memref<3x16xf32, #tpu.memory_space<vmem>>, %arg2: memref<1x16xf32, #tpu.memory_space<vmem>>, %arg3: memref<48x32xf32, #tpu.memory_space<vmem>>, %arg4: memref<1x32xf32, #tpu.memory_space<vmem>>, %arg5: memref<480x128xf32, #tpu.memory_space<vmem>>, %arg6: memref<1x128xf32, #tpu.memory_space<vmem>>, %arg7: memref<128x128xf32, #tpu.memory_space<vmem>>, %arg8: memref<1x128xf32, #tpu.memory_space<vmem>>, %arg9: memref<2x128xf32, #tpu.memory_space<vmem>>) attributes {dimension_semantics = [], scalar_prefetch = 0 : i64, scratch_operands = 0 : i64, tpu.core_type = #tpu.core_type<tc>} {
    %c0 = arith.constant 0 : index
    %c0_0 = arith.constant 0 : index
    %0 = vector.load %arg0[%c0, %c0_0] : memref<2x66xf32, #tpu.memory_space<vmem>>, vector<2x66xf32>
    %cst = arith.constant 0.000000e+00 : f32
    %1 = vector.broadcast %cst : f32 to vector<2x1xf32>
    %2 = vector.extract_strided_slice %0 {offsets = [0, 0], sizes = [2, 65], strides = [1, 1]} : vector<2x66xf32> to vector<2x65xf32>
    %3 = tpu.concatenate %1, %2 in 1 : vector<2x1xf32>, vector<2x65xf32> -> vector<2x66xf32>
    %4 = vector.extract_strided_slice %0 {offsets = [0, 1], sizes = [2, 65], strides = [1, 1]} : vector<2x66xf32> to vector<2x65xf32>
    %5 = tpu.concatenate %4, %1 in 1 : vector<2x65xf32>, vector<2x1xf32> -> vector<2x66xf32>
    %c0_1 = arith.constant 0 : index
    %c0_2 = arith.constant 0 : index
    %6 = vector.load %arg1[%c0_1, %c0_2] : memref<3x16xf32, #tpu.memory_space<vmem>>, vector<3x16xf32>
    %7 = vector.shape_cast %3 : vector<2x66xf32> to vector<2x66x1xf32>
    %8 = vector.extract_strided_slice %6 {offsets = [0, 0], sizes = [1, 16], strides = [1, 1]} : vector<3x16xf32> to vector<1x16xf32>
    %9 = vector.shape_cast %8 : vector<1x16xf32> to vector<16xf32>
    %10 = vector.shape_cast %9 : vector<16xf32> to vector<1x1x16xf32>
    %11 = vector.broadcast %7 : vector<2x66x1xf32> to vector<2x66x16xf32>
    %12 = vector.broadcast %10 : vector<1x1x16xf32> to vector<2x66x16xf32>
    %13 = arith.mulf %11, %12 : vector<2x66x16xf32>
    %14 = vector.shape_cast %0 : vector<2x66xf32> to vector<2x66x1xf32>
    %15 = vector.extract_strided_slice %6 {offsets = [1, 0], sizes = [1, 16], strides = [1, 1]} : vector<3x16xf32> to vector<1x16xf32>
    %16 = vector.shape_cast %15 : vector<1x16xf32> to vector<16xf32>
    %17 = vector.shape_cast %16 : vector<16xf32> to vector<1x1x16xf32>
    %18 = vector.broadcast %14 : vector<2x66x1xf32> to vector<2x66x16xf32>
    %19 = vector.broadcast %17 : vector<1x1x16xf32> to vector<2x66x16xf32>
    %20 = arith.mulf %18, %19 : vector<2x66x16xf32>
    %21 = arith.addf %13, %20 : vector<2x66x16xf32>
    %22 = vector.shape_cast %5 : vector<2x66xf32> to vector<2x66x1xf32>
    %23 = vector.extract_strided_slice %6 {offsets = [2, 0], sizes = [1, 16], strides = [1, 1]} : vector<3x16xf32> to vector<1x16xf32>
    %24 = vector.shape_cast %23 : vector<1x16xf32> to vector<16xf32>
    %25 = vector.shape_cast %24 : vector<16xf32> to vector<1x1x16xf32>
    %26 = vector.broadcast %22 : vector<2x66x1xf32> to vector<2x66x16xf32>
    %27 = vector.broadcast %25 : vector<1x1x16xf32> to vector<2x66x16xf32>
    %28 = arith.mulf %26, %27 : vector<2x66x16xf32>
    %29 = arith.addf %21, %28 : vector<2x66x16xf32>
    %c0_3 = arith.constant 0 : index
    %c0_4 = arith.constant 0 : index
    %30 = vector.load %arg2[%c0_3, %c0_4] : memref<1x16xf32, #tpu.memory_space<vmem>>, vector<1x16xf32>
    %31 = vector.shape_cast %30 : vector<1x16xf32> to vector<16xf32>
    %32 = vector.shape_cast %31 : vector<16xf32> to vector<1x1x16xf32>
    %33 = vector.broadcast %32 : vector<1x1x16xf32> to vector<2x66x16xf32>
    %34 = arith.addf %29, %33 : vector<2x66x16xf32>
    %cst_5 = arith.constant 0.000000e+00 : f32
    %35 = vector.broadcast %cst_5 : f32 to vector<2x66x16xf32>
    %36 = arith.maximumf %34, %35 : vector<2x66x16xf32>
    %37 = vector.shape_cast %36 : vector<2x66x16xf32> to vector<2x33x2x16xf32>
    %38 = vector.extract_strided_slice %37 {offsets = [0, 0, 0, 0], sizes = [2, 33, 1, 16], strides = [1, 1, 1, 1]} : vector<2x33x2x16xf32> to vector<2x33x1x16xf32>
    %39 = vector.shape_cast %38 : vector<2x33x1x16xf32> to vector<2x33x16xf32>
    %40 = vector.extract_strided_slice %37 {offsets = [0, 0, 1, 0], sizes = [2, 33, 1, 16], strides = [1, 1, 1, 1]} : vector<2x33x2x16xf32> to vector<2x33x1x16xf32>
    %41 = vector.shape_cast %40 : vector<2x33x1x16xf32> to vector<2x33x16xf32>
    %42 = arith.maximumf %39, %41 : vector<2x33x16xf32>
    %43 = vector.extract_strided_slice %42 {offsets = [0, 0, 0], sizes = [2, 32, 16], strides = [1, 1, 1]} : vector<2x33x16xf32> to vector<2x32x16xf32>
    %44 = vector.extract_strided_slice %42 {offsets = [0, 1, 0], sizes = [2, 32, 16], strides = [1, 1, 1]} : vector<2x33x16xf32> to vector<2x32x16xf32>
    %45 = arith.maximumf %43, %44 : vector<2x32x16xf32>
    %cst_6 = arith.constant 0.000000e+00 : f32
    %46 = vector.broadcast %cst_6 : f32 to vector<2x1x16xf32>
    %47 = tpu.concatenate %46, %45, %46 in 1 : vector<2x1x16xf32>, vector<2x32x16xf32>, vector<2x1x16xf32> -> vector<2x34x16xf32>
    %48 = vector.extract_strided_slice %47 {offsets = [0, 0, 0], sizes = [2, 32, 16], strides = [1, 1, 1]} : vector<2x34x16xf32> to vector<2x32x16xf32>
    %49 = vector.extract_strided_slice %47 {offsets = [0, 1, 0], sizes = [2, 32, 16], strides = [1, 1, 1]} : vector<2x34x16xf32> to vector<2x32x16xf32>
    %50 = vector.extract_strided_slice %47 {offsets = [0, 2, 0], sizes = [2, 32, 16], strides = [1, 1, 1]} : vector<2x34x16xf32> to vector<2x32x16xf32>
    %51 = tpu.concatenate %48, %49, %50 in 2 : vector<2x32x16xf32>, vector<2x32x16xf32>, vector<2x32x16xf32> -> vector<2x32x48xf32>
    %52 = vector.shape_cast %51 : vector<2x32x48xf32> to vector<64x48xf32>
    %c0_7 = arith.constant 0 : index
    %c0_8 = arith.constant 0 : index
    %53 = vector.load %arg3[%c0_7, %c0_8] : memref<48x32xf32, #tpu.memory_space<vmem>>, vector<48x32xf32>
    %cst_9 = arith.constant dense<0.000000e+00> : vector<64x32xf32>
    %54 = tpu.matmul %52, %53, %cst_9 {dimension_numbers = #tpu.dot_dimension_numbers<[1], [0], [0], [1], [0, 0, 1, 1], [], []>} : vector<64x48xf32>, vector<48x32xf32>, vector<64x32xf32> -> vector<64x32xf32>
    %55 = vector.shape_cast %54 : vector<64x32xf32> to vector<2x32x32xf32>
    %c0_10 = arith.constant 0 : index
    %c0_11 = arith.constant 0 : index
    %56 = vector.load %arg4[%c0_10, %c0_11] : memref<1x32xf32, #tpu.memory_space<vmem>>, vector<1x32xf32>
    %57 = vector.shape_cast %56 : vector<1x32xf32> to vector<32xf32>
    %58 = vector.shape_cast %57 : vector<32xf32> to vector<1x1x32xf32>
    %59 = vector.broadcast %58 : vector<1x1x32xf32> to vector<2x32x32xf32>
    %60 = arith.addf %55, %59 : vector<2x32x32xf32>
    %cst_12 = arith.constant 0.000000e+00 : f32
    %61 = vector.broadcast %cst_12 : f32 to vector<2x32x32xf32>
    %62 = arith.maximumf %60, %61 : vector<2x32x32xf32>
    %63 = vector.shape_cast %62 : vector<2x32x32xf32> to vector<2x16x2x32xf32>
    %64 = vector.extract_strided_slice %63 {offsets = [0, 0, 0, 0], sizes = [2, 16, 1, 32], strides = [1, 1, 1, 1]} : vector<2x16x2x32xf32> to vector<2x16x1x32xf32>
    %65 = vector.shape_cast %64 : vector<2x16x1x32xf32> to vector<2x16x32xf32>
    %66 = vector.extract_strided_slice %63 {offsets = [0, 0, 1, 0], sizes = [2, 16, 1, 32], strides = [1, 1, 1, 1]} : vector<2x16x2x32xf32> to vector<2x16x1x32xf32>
    %67 = vector.shape_cast %66 : vector<2x16x1x32xf32> to vector<2x16x32xf32>
    %68 = arith.maximumf %65, %67 : vector<2x16x32xf32>
    %69 = vector.extract_strided_slice %68 {offsets = [0, 0, 0], sizes = [2, 15, 32], strides = [1, 1, 1]} : vector<2x16x32xf32> to vector<2x15x32xf32>
    %70 = vector.extract_strided_slice %68 {offsets = [0, 1, 0], sizes = [2, 15, 32], strides = [1, 1, 1]} : vector<2x16x32xf32> to vector<2x15x32xf32>
    %71 = arith.maximumf %69, %70 : vector<2x15x32xf32>
    %72 = vector.shape_cast %71 : vector<2x15x32xf32> to vector<2x480xf32>
    %c0_13 = arith.constant 0 : index
    %c0_14 = arith.constant 0 : index
    %73 = vector.load %arg5[%c0_13, %c0_14] : memref<480x128xf32, #tpu.memory_space<vmem>>, vector<480x128xf32>
    %cst_15 = arith.constant dense<0.000000e+00> : vector<2x128xf32>
    %74 = tpu.matmul %72, %73, %cst_15 {dimension_numbers = #tpu.dot_dimension_numbers<[1], [0], [0], [1], [0, 0, 1, 1], [], []>} : vector<2x480xf32>, vector<480x128xf32>, vector<2x128xf32> -> vector<2x128xf32>
    %c0_16 = arith.constant 0 : index
    %c0_17 = arith.constant 0 : index
    %75 = vector.load %arg6[%c0_16, %c0_17] : memref<1x128xf32, #tpu.memory_space<vmem>>, vector<1x128xf32>
    %76 = vector.shape_cast %75 : vector<1x128xf32> to vector<128xf32>
    %77 = vector.shape_cast %76 : vector<128xf32> to vector<1x128xf32>
    %78 = vector.broadcast %77 : vector<1x128xf32> to vector<2x128xf32>
    %79 = arith.addf %74, %78 : vector<2x128xf32>
    %cst_18 = arith.constant 0.000000e+00 : f32
    %80 = vector.broadcast %cst_18 : f32 to vector<2x128xf32>
    %81 = arith.maximumf %79, %80 : vector<2x128xf32>
    %c0_19 = arith.constant 0 : index
    %c0_20 = arith.constant 0 : index
    %82 = vector.load %arg7[%c0_19, %c0_20] : memref<128x128xf32, #tpu.memory_space<vmem>>, vector<128x128xf32>
    %cst_21 = arith.constant dense<0.000000e+00> : vector<2x128xf32>
    %83 = tpu.matmul %81, %82, %cst_21 {dimension_numbers = #tpu.dot_dimension_numbers<[1], [0], [0], [1], [0, 0, 1, 1], [], []>} : vector<2x128xf32>, vector<128x128xf32>, vector<2x128xf32> -> vector<2x128xf32>
    %c0_22 = arith.constant 0 : index
    %c0_23 = arith.constant 0 : index
    %84 = vector.load %arg8[%c0_22, %c0_23] : memref<1x128xf32, #tpu.memory_space<vmem>>, vector<1x128xf32>
    %85 = vector.shape_cast %84 : vector<1x128xf32> to vector<128xf32>
    %86 = vector.shape_cast %85 : vector<128xf32> to vector<1x128xf32>
    %87 = vector.broadcast %86 : vector<1x128xf32> to vector<2x128xf32>
    %88 = arith.addf %83, %87 : vector<2x128xf32>
    %cst_24 = arith.constant 5.000000e-01 : f32
    %89 = vector.broadcast %cst_24 : f32 to vector<2x128xf32>
    %90 = arith.mulf %89, %88 : vector<2x128xf32>
    %91 = math.tanh %90 : vector<2x128xf32>
    %cst_25 = arith.constant 5.000000e-01 : f32
    %92 = vector.broadcast %cst_25 : f32 to vector<2x128xf32>
    %93 = arith.mulf %92, %91 : vector<2x128xf32>
    %cst_26 = arith.constant 5.000000e-01 : f32
    %94 = vector.broadcast %cst_26 : f32 to vector<2x128xf32>
    %95 = arith.addf %93, %94 : vector<2x128xf32>
    %c0_27 = arith.constant 0 : index
    %c0_28 = arith.constant 0 : index
    %96 = vector.load %arg9[%c0_27, %c0_28] : memref<2x128xf32, #tpu.memory_space<vmem>>, vector<2x128xf32>
    tpu.vector_store %arg9[%c0_27, %c0_28], %95 {strides = array<i32>} : memref<2x128xf32, #tpu.memory_space<vmem>>, vector<2x128xf32>,
    return
  }
}

</mosaic_0001>

<llo_original>
// kernel: cnn_forward.1
$region0: #{cnn_forward.1}
  #allocation0 [shape = 'u32[]', space=smem, size = 0x4, offset = 0x4, fixed_abs, tag = 'smem constant byte address 0x4 - core index']
  #allocation1 [shape = 'u32[144,128]{1,0:T(1,128)}', space=vmem, size = 0x12000, scoped, tag = 'internal scratch']
  %s0 = inlined_call_operand.vmem [shape: f32[2,66], index: 0, kind: input, shape index: {}]
  %s1 = inlined_call_operand.vmem [shape: f32[3,16], index: 1, kind: input, shape index: {}]
  %s2 = inlined_call_operand.vmem [shape: f32[1,16], index: 2, kind: input, shape index: {}]
  %s3 = inlined_call_operand.vmem [shape: f32[48,32], index: 3, kind: input, shape index: {}]
  %s4 = inlined_call_operand.vmem [shape: f32[1,32], index: 4, kind: input, shape index: {}]
  %s5 = inlined_call_operand.hbm [shape: f32[480,128], index: 5, kind: input, shape index: {}]
  %s6 = inlined_call_operand.vmem [shape: f32[1,128], index: 6, kind: input, shape index: {}]
  %s7 = inlined_call_operand.hbm [shape: f32[128,128], index: 7, kind: input, shape index: {}]
  %s8 = inlined_call_operand.vmem [shape: f32[1,128], index: 8, kind: input, shape index: {}]
  %s9 = inlined_call_operand.hbm [shape: f32[2,128], index: 9, kind: output, shape index: {}]
  %s10 = sld [smem:[#allocation0]]
  $region54: #{cnn_forward.1} parent=0
    _
  %s12 = ssub.s32 1, %s10
  %s13 = scalar_select 0, %s12, %s10
  $region1: #{cnn_forward.1} parent=0
    #allocation2 [shape = 'u8[245760]{0}', space=vmem, size = 0x3c000, scoped, tag = 'input window, operand 5, single buffered']
    #allocation3 [shape = 's32[1]{0}', space=sflag, size = 0x4, scoped, tag = 'scoped memory for cnn_forward.1']
    #allocation4 [shape = 's32[1]{0}', space=sflag, size = 0x4, scoped, tag = 'scoped memory for cnn_forward.1']
    #allocation5 [shape = 'u8[65536]{0}', space=vmem, size = 0x10000, scoped, tag = 'input window, operand 7, single buffered']
    #allocation6 [shape = 's32[1]{0}', space=sflag, size = 0x4, scoped, tag = 'scoped memory for cnn_forward.1']
    #allocation7 [shape = 'u8[1024]{0}', space=vmem, size = 0x400, scoped, tag = 'output window, operand 0, single buffered']
    %14 = vsyncpa [#allocation3], 0
    %15 = vsyncpa [#allocation6], 0
    %16 = vsyncpa [#allocation4], 0
    // Predicated region
    $region2: #{cnn_forward.1} parent=1 // pred_check
      _
    $region3: #{cnn_forward.1} parent=1 // pred_check_branch
      %18 = sbr.rel (0) target = $region5
    $region4: #{cnn_forward.1} parent=1 // pred_region
      _
    $region5: #{cnn_forward.1} parent=1 // pred_fallthru
      _
    // Predicated region
    $region6: #{cnn_forward.1} parent=1 // pred_check
      _
    $region7: #{cnn_forward.1} parent=1 // pred_check_branch
      %20 = sbr.rel (0) target = $region9
    $region8: #{cnn_forward.1} parent=1 // pred_region
      _
    $region9: #{cnn_forward.1} parent=1 // pred_fallthru
      _
    // Predicated region
    $region10: #{cnn_forward.1} parent=1 // pred_check
      _
    $region11: #{cnn_forward.1} parent=1 // pred_check_branch
      %22 = sbr.rel (0) target = $region13
    $region12: #{cnn_forward.1} parent=1 // pred_region
      _
    $region13: #{cnn_forward.1} parent=1 // pred_fallthru
      _
    // Predicated region
    $region14: #{cnn_forward.1} parent=1 // pred_check
      _
    $region15: #{cnn_forward.1} parent=1 // pred_check_branch
      %24 = sbr.rel (0) target = $region17
    $region16: #{cnn_forward.1} parent=1 // pred_region
      _
    $region17: #{cnn_forward.1} parent=1 // pred_fallthru
      _
    // Predicated region
    $region18: #{cnn_forward.1} parent=1 // pred_check
      _
    $region19: #{cnn_forward.1} parent=1 // pred_check_branch
      %26 = sbr.rel (0) target = $region21
    $region20: #{cnn_forward.1} parent=1 // pred_region
      _
    $region21: #{cnn_forward.1} parent=1 // pred_fallthru
      _
    // Predicated region
    $region22: #{cnn_forward.1} parent=1 // pred_check
      _
    $region23: #{cnn_forward.1} parent=1 // pred_check_branch
      %28 = sbr.rel (0) target = $region25
    $region24: #{cnn_forward.1} parent=1 // pred_region
      %s30 = ssub.s32 7680, 7680
      %31 = vsyncadd [#allocation3], %s30
      %s32 = sshll.u32 [#allocation2], 4
      %s33 = int_to_ptr.vmem [resolvable:$true] %s32
      %38 = dma.hbm_to_vmem [thread:$0]  %s5, 7680, %s33, [#allocation3], 128, 128, 8
    $region25: #{cnn_forward.1} parent=1 // pred_fallthru
      _
    // Predicated region
    $region26: #{cnn_forward.1} parent=1 // pred_check
      _
    $region27: #{cnn_forward.1} parent=1 // pred_check_branch
      %40 = sbr.rel (0) target = $region29
    $region28: #{cnn_forward.1} parent=1 // pred_region
      _
    $region29: #{cnn_forward.1} parent=1 // pred_fallthru
      _
    // Predicated region
    $region30: #{cnn_forward.1} parent=1 // pred_check
      _
    $region31: #{cnn_forward.1} parent=1 // pred_check_branch
      %42 = sbr.rel (0) target = $region33
    $region32: #{cnn_forward.1} parent=1 // pred_region
      %s44 = ssub.s32 2048, 2048
      %45 = vsyncadd [#allocation6], %s44
      %s46 = sshll.u32 [#allocation5], 4
      %s47 = int_to_ptr.vmem [resolvable:$true] %s46
      %52 = dma.hbm_to_vmem [thread:$0]  %s7, 2048, %s47, [#allocation6], 128, 128, 8
    $region33: #{cnn_forward.1} parent=1 // pred_fallthru
      _
    // Predicated region
    $region34: #{cnn_forward.1} parent=1 // pred_check
      _
    $region35: #{cnn_forward.1} parent=1 // pred_check_branch
      %54 = sbr.rel (0) target = $region37
    $region36: #{cnn_forward.1} parent=1 // pred_region
      _
    $region37: #{cnn_forward.1} parent=1 // pred_fallthru
      _
    // Predicated region
    $region38: #{cnn_forward.1} parent=1 // pred_check
      _
    $region39: #{cnn_forward.1} parent=1 // pred_check_branch
      %56 = sbr.rel (0) target = $region41
    $region40: #{cnn_forward.1} parent=1 // pred_region
      %57 = dma.done [#allocation3], 7680
    $region41: #{cnn_forward.1} parent=1 // pred_fallthru
      _
    // Predicated region
    $region42: #{cnn_forward.1} parent=1 // pred_check
      _
    $region43: #{cnn_forward.1} parent=1 // pred_check_branch
      %59 = sbr.rel (0) target = $region45
    $region44: #{cnn_forward.1} parent=1 // pred_region
      %60 = dma.done [#allocation6], 2048
    $region45: #{cnn_forward.1} parent=1 // pred_fallthru
      _
    %v61 = vld [vmem:[%s0] sm:$0x3]
    %63 = vrot.lane.b32.xlu0 %v61, 1
    %v64 = vpop.permute.xlu0 %63
    %vm66 = vcmask 7168
    %v67 = vsel %vm66, 0.0, %v64
    %68 = vrot.lane.b32.xlu0 %v61, 127
    %v69 = vpop.permute.xlu0 %68
    %vm71 = vcmask 531456
    %v72 = vsel %vm71, %v69, 0.0
    %v73 = vld [vmem:[%s1] sm:$0x7]
    %v74 = vlaneseq
    %v75 = vshrl.u32 %v74, 7
    %v76 = vsub.s32 0, %v75
    %v77 = vrot.slane %v67, %v76
    %79 = vbcast.lane.b32.xlu0 %v77, 256
    %v80 = vpop.permute.xlu0 %79
    %s82 = sor.u32 256, 8
    %83 = vbcast.lane.b32.xlu0 %v77, %s82
    %v84 = vpop.permute.xlu0 %83
    %s86 = sor.u32 256, 16
    %87 = vbcast.lane.b32.xlu0 %v77, %s86
    %v88 = vpop.permute.xlu0 %87
    %s90 = sor.u32 256, 24
    %91 = vbcast.lane.b32.xlu0 %v77, %s90
    %v92 = vpop.permute.xlu0 %91
    %s94 = sor.u32 256, 32
    %95 = vbcast.lane.b32.xlu0 %v77, %s94
    %v96 = vpop.permute.xlu0 %95
    %s98 = sor.u32 256, 40
    %99 = vbcast.lane.b32.xlu0 %v77, %s98
    %v100 = vpop.permute.xlu0 %99
    %s102 = sor.u32 256, 48
    %103 = vbcast.lane.b32.xlu0 %v77, %s102
    %v104 = vpop.permute.xlu0 %103
    %s106 = sor.u32 256, 56
    %107 = vbcast.lane.b32.xlu0 %v77, %s106
    %v108 = vpop.permute.xlu0 %107
    %s110 = sor.u32 256, 64
    %111 = vbcast.lane.b32.xlu0 %v77, %s110
    %v112 = vpop.permute.xlu0 %111
    %v113 = vlaneseq
    %v114 = vshrl.u32 %v113, 7
    %v115 = vsub.s32 1, %v114
    %v116 = vrot.slane %v67, %v115
    %118 = vbcast.lane.b32.xlu0 %v116, 256
    %v119 = vpop.permute.xlu0 %118
    %s121 = sor.u32 256, 8
    %122 = vbcast.lane.b32.xlu0 %v116, %s121
    %v123 = vpop.permute.xlu0 %122
    %s125 = sor.u32 256, 16
    %126 = vbcast.lane.b32.xlu0 %v116, %s125
    %v127 = vpop.permute.xlu0 %126
    %s129 = sor.u32 256, 24
    %130 = vbcast.lane.b32.xlu0 %v116, %s129
    %v131 = vpop.permute.xlu0 %130
    %s133 = sor.u32 256, 32
    %134 = vbcast.lane.b32.xlu0 %v116, %s133
    %v135 = vpop.permute.xlu0 %134
    %s137 = sor.u32 256, 40
    %138 = vbcast.lane.b32.xlu0 %v116, %s137
    %v139 = vpop.permute.xlu0 %138
    %s141 = sor.u32 256, 48
    %142 = vbcast.lane.b32.xlu0 %v116, %s141
    %v143 = vpop.permute.xlu0 %142
    %s145 = sor.u32 256, 56
    %146 = vbcast.lane.b32.xlu0 %v116, %s145
    %v147 = vpop.permute.xlu0 %146
    %s149 = sor.u32 256, 64
    %150 = vbcast.lane.b32.xlu0 %v116, %s149
    %v151 = vpop.permute.xlu0 %150
    %v152 = vlaneseq
    %v153 = vshrl.u32 %v152, 7
    %v154 = vsub.s32 0, %v153
    %v155 = vrot.slane %v73, %v154
    %v156 = vmul.f32 %v80, %v155
    %v157 = vmul.f32 %v84, %v155
    %v158 = vmul.f32 %v88, %v155
    %v159 = vmul.f32 %v92, %v155
    %v160 = vmul.f32 %v96, %v155
    %v161 = vmul.f32 %v100, %v155
    %v162 = vmul.f32 %v104, %v155
    %v163 = vmul.f32 %v108, %v155
    %v164 = vmul.f32 %v112, %v155
    %v165 = vmul.f32 %v119, %v155
    %v166 = vmul.f32 %v123, %v155
    %v167 = vmul.f32 %v127, %v155
    %v168 = vmul.f32 %v131, %v155
    %v169 = vmul.f32 %v135, %v155
    %v170 = vmul.f32 %v139, %v155
    %v171 = vmul.f32 %v143, %v155
    %v172 = vmul.f32 %v147, %v155
    %v173 = vmul.f32 %v151, %v155
    %v174 = vlaneseq
    %v175 = vshrl.u32 %v174, 7
    %v176 = vsub.s32 0, %v175
    %v177 = vrot.slane %v61, %v176
    %179 = vbcast.lane.b32.xlu0 %v177, 256
    %v180 = vpop.permute.xlu0 %179
    %s182 = sor.u32 256, 8
    %183 = vbcast.lane.b32.xlu0 %v177, %s182
    %v184 = vpop.permute.xlu0 %183
    %s186 = sor.u32 256, 16
    %187 = vbcast.lane.b32.xlu0 %v177, %s186
    %v188 = vpop.permute.xlu0 %187
    %s190 = sor.u32 256, 24
    %191 = vbcast.lane.b32.xlu0 %v177, %s190
    %v192 = vpop.permute.xlu0 %191
    %s194 = sor.u32 256, 32
    %195 = vbcast.lane.b32.xlu0 %v177, %s194
    %v196 = vpop.permute.xlu0 %195
    %s198 = sor.u32 256, 40
    %199 = vbcast.lane.b32.xlu0 %v177, %s198
    %v200 = vpop.permute.xlu0 %199
    %s202 = sor.u32 256, 48
    %203 = vbcast.lane.b32.xlu0 %v177, %s202
    %v204 = vpop.permute.xlu0 %203
    %s206 = sor.u32 256, 56
    %207 = vbcast.lane.b32.xlu0 %v177, %s206
    %v208 = vpop.permute.xlu0 %207
    %s210 = sor.u32 256, 64
    %211 = vbcast.lane.b32.xlu0 %v177, %s210
    %v212 = vpop.permute.xlu0 %211
    %v213 = vlaneseq
    %v214 = vshrl.u32 %v213, 7
    %v215 = vsub.s32 1, %v214
    %v216 = vrot.slane %v61, %v215
    %218 = vbcast.lane.b32.xlu0 %v216, 256
    %v219 = vpop.permute.xlu0 %218
    %s221 = sor.u32 256, 8
    %222 = vbcast.lane.b32.xlu0 %v216, %s221
    %v223 = vpop.permute.xlu0 %222
    %s225 = sor.u32 256, 16
    %226 = vbcast.lane.b32.xlu0 %v216, %s225
    %v227 = vpop.permute.xlu0 %226
    %s229 = sor.u32 256, 24
    %230 = vbcast.lane.b32.xlu0 %v216, %s229
    %v231 = vpop.permute.xlu0 %230
    %s233 = sor.u32 256, 32
    %234 = vbcast.lane.b32.xlu0 %v216, %s233
    %v235 = vpop.permute.xlu0 %234
    %s237 = sor.u32 256, 40
    %238 = vbcast.lane.b32.xlu0 %v216, %s237
    %v239 = vpop.permute.xlu0 %238
    %s241 = sor.u32 256, 48
    %242 = vbcast.lane.b32.xlu0 %v216, %s241
    %v243 = vpop.permute.xlu0 %242
    %s245 = sor.u32 256, 56
    %246 = vbcast.lane.b32.xlu0 %v216, %s245
    %v247 = vpop.permute.xlu0 %246
    %s249 = sor.u32 256, 64
    %250 = vbcast.lane.b32.xlu0 %v216, %s249
    %v251 = vpop.permute.xlu0 %250
    %v252 = vlaneseq
    %v253 = vshrl.u32 %v252, 7
    %v254 = vsub.s32 1, %v253
    %v255 = vrot.slane %v73, %v254
    %v256 = vmul.f32 %v180, %v255
    %v257 = vmul.f32 %v184, %v255
    %v258 = vmul.f32 %v188, %v255
    %v259 = vmul.f32 %v192, %v255
    %v260 = vmul.f32 %v196, %v255
    %v261 = vmul.f32 %v200, %v255
    %v262 = vmul.f32 %v204, %v255
    %v263 = vmul.f32 %v208, %v255
    %v264 = vmul.f32 %v212, %v255
    %v265 = vmul.f32 %v219, %v255
    %v266 = vmul.f32 %v223, %v255
    %v267 = vmul.f32 %v227, %v255
    %v268 = vmul.f32 %v231, %v255
    %v269 = vmul.f32 %v235, %v255
    %v270 = vmul.f32 %v239, %v255
    %v271 = vmul.f32 %v243, %v255
    %v272 = vmul.f32 %v247, %v255
    %v273 = vmul.f32 %v251, %v255
    %v274 = vadd.f32 %v156, %v256
    %v275 = vadd.f32 %v157, %v257
    %v276 = vadd.f32 %v158, %v258
    %v277 = vadd.f32 %v159, %v259
    %v278 = vadd.f32 %v160, %v260
    %v279 = vadd.f32 %v161, %v261
    %v280 = vadd.f32 %v162, %v262
    %v281 = vadd.f32 %v163, %v263
    %v282 = vadd.f32 %v164, %v264
    %v283 = vadd.f32 %v165, %v265
    %v284 = vadd.f32 %v166, %v266
    %v285 = vadd.f32 %v167, %v267
    %v286 = vadd.f32 %v168, %v268
    %v287 = vadd.f32 %v169, %v269
    %v288 = vadd.f32 %v170, %v270
    %v289 = vadd.f32 %v171, %v271
    %v290 = vadd.f32 %v172, %v272
    %v291 = vadd.f32 %v173, %v273
    %v292 = vlaneseq
    %v293 = vshrl.u32 %v292, 7
    %v294 = vsub.s32 0, %v293
    %v295 = vrot.slane %v72, %v294
    %297 = vbcast.lane.b32.xlu0 %v295, 256
    %v298 = vpop.permute.xlu0 %297
    %s300 = sor.u32 256, 8
    %301 = vbcast.lane.b32.xlu0 %v295, %s300
    %v302 = vpop.permute.xlu0 %301
    %s304 = sor.u32 256, 16
    %305 = vbcast.lane.b32.xlu0 %v295, %s304
    %v306 = vpop.permute.xlu0 %305
    %s308 = sor.u32 256, 24
    %309 = vbcast.lane.b32.xlu0 %v295, %s308
    %v310 = vpop.permute.xlu0 %309
    %s312 = sor.u32 256, 32
    %313 = vbcast.lane.b32.xlu0 %v295, %s312
    %v314 = vpop.permute.xlu0 %313
    %s316 = sor.u32 256, 40
    %317 = vbcast.lane.b32.xlu0 %v295, %s316
    %v318 = vpop.permute.xlu0 %317
    %s320 = sor.u32 256, 48
    %321 = vbcast.lane.b32.xlu0 %v295, %s320
    %v322 = vpop.permute.xlu0 %321
    %s324 = sor.u32 256, 56
    %325 = vbcast.lane.b32.xlu0 %v295, %s324
    %v326 = vpop.permute.xlu0 %325
    %s328 = sor.u32 256, 64
    %329 = vbcast.lane.b32.xlu0 %v295, %s328
    %v330 = vpop.permute.xlu0 %329
    %v331 = vlaneseq
    %v332 = vshrl.u32 %v331, 7
    %v333 = vsub.s32 1, %v332
    %v334 = vrot.slane %v72, %v333
    %336 = vbcast.lane.b32.xlu0 %v334, 256
    %v337 = vpop.permute.xlu0 %336
    %s339 = sor.u32 256, 8
    %340 = vbcast.lane.b32.xlu0 %v334, %s339
    %v341 = vpop.permute.xlu0 %340
    %s343 = sor.u32 256, 16
    %344 = vbcast.lane.b32.xlu0 %v334, %s343
    %v345 = vpop.permute.xlu0 %344
    %s347 = sor.u32 256, 24
    %348 = vbcast.lane.b32.xlu0 %v334, %s347
    %v349 = vpop.permute.xlu0 %348
    %s351 = sor.u32 256, 32
    %352 = vbcast.lane.b32.xlu0 %v334, %s351
    %v353 = vpop.permute.xlu0 %352
    %s355 = sor.u32 256, 40
    %356 = vbcast.lane.b32.xlu0 %v334, %s355
    %v357 = vpop.permute.xlu0 %356
    %s359 = sor.u32 256, 48
    %360 = vbcast.lane.b32.xlu0 %v334, %s359
    %v361 = vpop.permute.xlu0 %360
    %s363 = sor.u32 256, 56
    %364 = vbcast.lane.b32.xlu0 %v334, %s363
    %v365 = vpop.permute.xlu0 %364
    %s367 = sor.u32 256, 64
    %368 = vbcast.lane.b32.xlu0 %v334, %s367
    %v369 = vpop.permute.xlu0 %368
    %v370 = vlaneseq
    %v371 = vshrl.u32 %v370, 7
    %v372 = vsub.s32 2, %v371
    %v373 = vrot.slane %v73, %v372
    %v374 = vmul.f32 %v298, %v373
    %v375 = vmul.f32 %v302, %v373
    %v376 = vmul.f32 %v306, %v373
    %v377 = vmul.f32 %v310, %v373
    %v378 = vmul.f32 %v314, %v373
    %v379 = vmul.f32 %v318, %v373
    %v380 = vmul.f32 %v322, %v373
    %v381 = vmul.f32 %v326, %v373
    %v382 = vmul.f32 %v330, %v373
    %v383 = vmul.f32 %v337, %v373
    %v384 = vmul.f32 %v341, %v373
    %v385 = vmul.f32 %v345, %v373
    %v386 = vmul.f32 %v349, %v373
    %v387 = vmul.f32 %v353, %v373
    %v388 = vmul.f32 %v357, %v373
    %v389 = vmul.f32 %v361, %v373
    %v390 = vmul.f32 %v365, %v373
    %v391 = vmul.f32 %v369, %v373
    %v392 = vadd.f32 %v274, %v374
    %v393 = vadd.f32 %v275, %v375
    %v394 = vadd.f32 %v276, %v376
    %v395 = vadd.f32 %v277, %v377
    %v396 = vadd.f32 %v278, %v378
    %v397 = vadd.f32 %v279, %v379
    %v398 = vadd.f32 %v280, %v380
    %v399 = vadd.f32 %v281, %v381
    %v400 = vadd.f32 %v282, %v382
    %v401 = vadd.f32 %v283, %v383
    %v402 = vadd.f32 %v284, %v384
    %v403 = vadd.f32 %v285, %v385
    %v404 = vadd.f32 %v286, %v386
    %v405 = vadd.f32 %v287, %v387
    %v406 = vadd.f32 %v288, %v388
    %v407 = vadd.f32 %v289, %v389
    %v408 = vadd.f32 %v290, %v390
    %v409 = vadd.f32 %v291, %v391
    %v410 = vld [vmem:[%s2] sm:$0x1]
    %v412 = vlaneseq
    %v413 = vshrl.u32 %v412, 7
    %v414 = vsub.s32 0, %v413
    %v415 = vrot.slane %v410, %v414
    %v417 = vadd.f32 %v392, %v415
    %v418 = vadd.f32 %v393, %v415
    %v419 = vadd.f32 %v394, %v415
    %v420 = vadd.f32 %v395, %v415
    %v421 = vadd.f32 %v396, %v415
    %v422 = vadd.f32 %v397, %v415
    %v423 = vadd.f32 %v398, %v415
    %v424 = vadd.f32 %v399, %v415
    %v425 = vadd.f32 %v400, %v415
    %v426 = vadd.f32 %v401, %v415
    %v427 = vadd.f32 %v402, %v415
    %v428 = vadd.f32 %v403, %v415
    %v429 = vadd.f32 %v404, %v415
    %v430 = vadd.f32 %v405, %v415
    %v431 = vadd.f32 %v406, %v415
    %v432 = vadd.f32 %v407, %v415
    %v433 = vadd.f32 %v408, %v415
    %v434 = vadd.f32 %v409, %v415
    %v435 = vmax.f32 %v417, 0.0
    %v436 = vmax.f32 %v418, 0.0
    %v437 = vmax.f32 %v419, 0.0
    %v438 = vmax.f32 %v420, 0.0
    %v439 = vmax.f32 %v421, 0.0
    %v440 = vmax.f32 %v422, 0.0
    %v441 = vmax.f32 %v423, 0.0
    %v442 = vmax.f32 %v424, 0.0
    %v443 = vmax.f32 %v425, 0.0
    %v444 = vmax.f32 %v426, 0.0
    %v445 = vmax.f32 %v427, 0.0
    %v446 = vmax.f32 %v428, 0.0
    %v447 = vmax.f32 %v429, 0.0
    %v448 = vmax.f32 %v430, 0.0
    %v449 = vmax.f32 %v431, 0.0
    %v450 = vmax.f32 %v432, 0.0
    %v451 = vmax.f32 %v433, 0.0
    %v452 = vmax.f32 %v434, 0.0
    %v471 = vcombine.high %v435, %v435
    %v473 = vunpack.c.l.s4 1983009808
    %v474 = vunpack.c.0.s8 %v473
    %v475 = vlaneseq
    %v476 = vshrl.u32 %v475, 7
    %v477 = vsub.s32 %v474, %v476
    %v478 = vrot.slane %v435, %v477
    %v480 = vunpack.c.l.s4 1983009808
    %v481 = vunpack.c.0.s8 %v480
    %v482 = vlaneseq
    %v483 = vshrl.u32 %v482, 7
    %v484 = vsub.s32 %v481, %v483
    %v485 = vrot.slane %v471, %v484
    %v486 = vcombine.high %v478, %v478
    %v487 = vcombine.high %v485, %v485
    %v488 = vcombine.high %v436, %v436
    %v490 = vunpack.c.l.s4 1983009808
    %v491 = vunpack.c.0.s8 %v490
    %v492 = vlaneseq
    %v493 = vshrl.u32 %v492, 7
    %v494 = vsub.s32 %v491, %v493
    %v495 = vrot.slane %v436, %v494
    %v497 = vunpack.c.l.s4 1983009808
    %v498 = vunpack.c.0.s8 %v497
    %v499 = vlaneseq
    %v500 = vshrl.u32 %v499, 7
    %v501 = vsub.s32 %v498, %v500
    %v502 = vrot.slane %v488, %v501
    %v503 = vcombine.high %v495, %v495
    %v504 = vcombine.high %v502, %v502
    %v505 = vcombine.high %v437, %v437
    %v507 = vunpack.c.l.s4 1983009808
    %v508 = vunpack.c.0.s8 %v507
    %v509 = vlaneseq
    %v510 = vshrl.u32 %v509, 7
    %v511 = vsub.s32 %v508, %v510
    %v512 = vrot.slane %v437, %v511
    %v514 = vunpack.c.l.s4 1983009808
    %v515 = vunpack.c.0.s8 %v514
    %v516 = vlaneseq
    %v517 = vshrl.u32 %v516, 7
    %v518 = vsub.s32 %v515, %v517
    %v519 = vrot.slane %v505, %v518
    %v520 = vcombine.high %v512, %v512
    %v521 = vcombine.high %v519, %v519
    %v522 = vcombine.high %v438, %v438
    %v524 = vunpack.c.l.s4 1983009808
    %v525 = vunpack.c.0.s8 %v524
    %v526 = vlaneseq
    %v527 = vshrl.u32 %v526, 7
    %v528 = vsub.s32 %v525, %v527
    %v529 = vrot.slane %v438, %v528
    %v531 = vunpack.c.l.s4 1983009808
    %v532 = vunpack.c.0.s8 %v531
    %v533 = vlaneseq
    %v534 = vshrl.u32 %v533, 7
    %v535 = vsub.s32 %v532, %v534
    %v536 = vrot.slane %v522, %v535
    %v537 = vcombine.high %v529, %v529
    %v538 = vcombine.high %v536, %v536
    %v539 = vcombine.high %v439, %v439
    %v541 = vunpack.c.l.s4 1983009808
    %v542 = vunpack.c.0.s8 %v541
    %v543 = vlaneseq
    %v544 = vshrl.u32 %v543, 7
    %v545 = vsub.s32 %v542, %v544
    %v546 = vrot.slane %v439, %v545
    %v548 = vunpack.c.l.s4 1983009808
    %v549 = vunpack.c.0.s8 %v548
    %v550 = vlaneseq
    %v551 = vshrl.u32 %v550, 7
    %v552 = vsub.s32 %v549, %v551
    %v553 = vrot.slane %v539, %v552
    %v554 = vcombine.high %v546, %v546
    %v555 = vcombine.high %v553, %v553
    %v556 = vcombine.high %v440, %v440
    %v558 = vunpack.c.l.s4 1983009808
    %v559 = vunpack.c.0.s8 %v558
    %v560 = vlaneseq
    %v561 = vshrl.u32 %v560, 7
    %v562 = vsub.s32 %v559, %v561
    %v563 = vrot.slane %v440, %v562
    %v565 = vunpack.c.l.s4 1983009808
    %v566 = vunpack.c.0.s8 %v565
    %v567 = vlaneseq
    %v568 = vshrl.u32 %v567, 7
    %v569 = vsub.s32 %v566, %v568
    %v570 = vrot.slane %v556, %v569
    %v571 = vcombine.high %v563, %v563
    %v572 = vcombine.high %v570, %v570
    %v573 = vcombine.high %v441, %v441
    %v575 = vunpack.c.l.s4 1983009808
    %v576 = vunpack.c.0.s8 %v575
    %v577 = vlaneseq
    %v578 = vshrl.u32 %v577, 7
    %v579 = vsub.s32 %v576, %v578
    %v580 = vrot.slane %v441, %v579
    %v582 = vunpack.c.l.s4 1983009808
    %v583 = vunpack.c.0.s8 %v582
    %v584 = vlaneseq
    %v585 = vshrl.u32 %v584, 7
    %v586 = vsub.s32 %v583, %v585
    %v587 = vrot.slane %v573, %v586
    %v588 = vcombine.high %v580, %v580
    %v589 = vcombine.high %v587, %v587
    %v590 = vcombine.high %v442, %v442
    %v592 = vunpack.c.l.s4 1983009808
    %v593 = vunpack.c.0.s8 %v592
    %v594 = vlaneseq
    %v595 = vshrl.u32 %v594, 7
    %v596 = vsub.s32 %v593, %v595
    %v597 = vrot.slane %v442, %v596
    %v599 = vunpack.c.l.s4 1983009808
    %v600 = vunpack.c.0.s8 %v599
    %v601 = vlaneseq
    %v602 = vshrl.u32 %v601, 7
    %v603 = vsub.s32 %v600, %v602
    %v604 = vrot.slane %v590, %v603
    %v605 = vcombine.high %v597, %v597
    %v606 = vcombine.high %v604, %v604
    %v608 = vunpack.c.l.s4 1983009808
    %v609 = vunpack.c.0.s8 %v608
    %v610 = vlaneseq
    %v611 = vshrl.u32 %v610, 7
    %v612 = vsub.s32 %v609, %v611
    %v613 = vrot.slane %v443, %v612
    %v614 = vcombine.high %v444, %v444
    %v616 = vunpack.c.l.s4 1983009808
    %v617 = vunpack.c.0.s8 %v616
    %v618 = vlaneseq
    %v619 = vshrl.u32 %v618, 7
    %v620 = vsub.s32 %v617, %v619
    %v621 = vrot.slane %v444, %v620
    %v623 = vunpack.c.l.s4 1983009808
    %v624 = vunpack.c.0.s8 %v623
    %v625 = vlaneseq
    %v626 = vshrl.u32 %v625, 7
    %v627 = vsub.s32 %v624, %v626
    %v628 = vrot.slane %v614, %v627
    %v629 = vcombine.high %v621, %v621
    %v630 = vcombine.high %v628, %v628
    %v631 = vcombine.high %v445, %v445
    %v633 = vunpack.c.l.s4 1983009808
    %v634 = vunpack.c.0.s8 %v633
    %v635 = vlaneseq
    %v636 = vshrl.u32 %v635, 7
    %v637 = vsub.s32 %v634, %v636
    %v638 = vrot.slane %v445, %v637
    %v640 = vunpack.c.l.s4 1983009808
    %v641 = vunpack.c.0.s8 %v640
    %v642 = vlaneseq
    %v643 = vshrl.u32 %v642, 7
    %v644 = vsub.s32 %v641, %v643
    %v645 = vrot.slane %v631, %v644
    %v646 = vcombine.high %v638, %v638
    %v647 = vcombine.high %v645, %v645
    %v648 = vcombine.high %v446, %v446
    %v650 = vunpack.c.l.s4 1983009808
    %v651 = vunpack.c.0.s8 %v650
    %v652 = vlaneseq
    %v653 = vshrl.u32 %v652, 7
    %v654 = vsub.s32 %v651, %v653
    %v655 = vrot.slane %v446, %v654
    %v657 = vunpack.c.l.s4 1983009808
    %v658 = vunpack.c.0.s8 %v657
    %v659 = vlaneseq
    %v660 = vshrl.u32 %v659, 7
    %v661 = vsub.s32 %v658, %v660
    %v662 = vrot.slane %v648, %v661
    %v663 = vcombine.high %v655, %v655
    %v664 = vcombine.high %v662, %v662
    %v665 = vcombine.high %v447, %v447
    %v667 = vunpack.c.l.s4 1983009808
    %v668 = vunpack.c.0.s8 %v667
    %v669 = vlaneseq
    %v670 = vshrl.u32 %v669, 7
    %v671 = vsub.s32 %v668, %v670
    %v672 = vrot.slane %v447, %v671
    %v674 = vunpack.c.l.s4 1983009808
    %v675 = vunpack.c.0.s8 %v674
    %v676 = vlaneseq
    %v677 = vshrl.u32 %v676, 7
    %v678 = vsub.s32 %v675, %v677
    %v679 = vrot.slane %v665, %v678
    %v680 = vcombine.high %v672, %v672
    %v681 = vcombine.high %v679, %v679
    %v682 = vcombine.high %v448, %v448
    %v684 = vunpack.c.l.s4 1983009808
    %v685 = vunpack.c.0.s8 %v684
    %v686 = vlaneseq
    %v687 = vshrl.u32 %v686, 7
    %v688 = vsub.s32 %v685, %v687
    %v689 = vrot.slane %v448, %v688
    %v691 = vunpack.c.l.s4 1983009808
    %v692 = vunpack.c.0.s8 %v691
    %v693 = vlaneseq
    %v694 = vshrl.u32 %v693, 7
    %v695 = vsub.s32 %v692, %v694
    %v696 = vrot.slane %v682, %v695
    %v697 = vcombine.high %v689, %v689
    %v698 = vcombine.high %v696, %v696
    %v699 = vcombine.high %v449, %v449
    %v701 = vunpack.c.l.s4 1983009808
    %v702 = vunpack.c.0.s8 %v701
    %v703 = vlaneseq
    %v704 = vshrl.u32 %v703, 7
    %v705 = vsub.s32 %v702, %v704
    %v706 = vrot.slane %v449, %v705
    %v708 = vunpack.c.l.s4 1983009808
    %v709 = vunpack.c.0.s8 %v708
    %v710 = vlaneseq
    %v711 = vshrl.u32 %v710, 7
    %v712 = vsub.s32 %v709, %v711
    %v713 = vrot.slane %v699, %v712
    %v714 = vcombine.high %v706, %v706
    %v715 = vcombine.high %v713, %v713
    %v716 = vcombine.high %v450, %v450
    %v718 = vunpack.c.l.s4 1983009808
    %v719 = vunpack.c.0.s8 %v718
    %v720 = vlaneseq
    %v721 = vshrl.u32 %v720, 7
    %v722 = vsub.s32 %v719, %v721
    %v723 = vrot.slane %v450, %v722
    %v725 = vunpack.c.l.s4 1983009808
    %v726 = vunpack.c.0.s8 %v725
    %v727 = vlaneseq
    %v728 = vshrl.u32 %v727, 7
    %v729 = vsub.s32 %v726, %v728
    %v730 = vrot.slane %v716, %v729
    %v731 = vcombine.high %v723, %v723
    %v732 = vcombine.high %v730, %v730
    %v733 = vcombine.high %v451, %v451
    %v735 = vunpack.c.l.s4 1983009808
    %v736 = vunpack.c.0.s8 %v735
    %v737 = vlaneseq
    %v738 = vshrl.u32 %v737, 7
    %v739 = vsub.s32 %v736, %v738
    %v740 = vrot.slane %v451, %v739
    %v742 = vunpack.c.l.s4 1983009808
    %v743 = vunpack.c.0.s8 %v742
    %v744 = vlaneseq
    %v745 = vshrl.u32 %v744, 7
    %v746 = vsub.s32 %v743, %v745
    %v747 = vrot.slane %v733, %v746
    %v748 = vcombine.high %v740, %v740
    %v749 = vcombine.high %v747, %v747
    %v751 = vunpack.c.l.s4 1983009808
    %v752 = vunpack.c.0.s8 %v751
    %v753 = vlaneseq
    %v754 = vshrl.u32 %v753, 7
    %v755 = vsub.s32 %v752, %v754
    %v756 = vrot.slane %v452, %v755
    %v823 = vrot.slane %v478, 7
    %v824 = vrot.slane %v823, 2
    %v825 = vrot.slane %v486, 7
    %v826 = vrot.slane %v825, 2
    %v827 = vrot.slane %v485, 7
    %v828 = vrot.slane %v827, 2
    %v829 = vrot.slane %v487, 7
    %v830 = vrot.slane %v829, 2
    %v831 = vrot.slane %v495, 7
    %v832 = vrot.slane %v831, 2
    %v833 = vrot.slane %v503, 7
    %v834 = vrot.slane %v833, 2
    %v835 = vrot.slane %v502, 7
    %v836 = vrot.slane %v835, 2
    %v837 = vrot.slane %v504, 7
    %v838 = vrot.slane %v837, 2
    %v839 = vrot.slane %v512, 7
    %v840 = vrot.slane %v839, 2
    %v841 = vrot.slane %v520, 7
    %v842 = vrot.slane %v841, 2
    %v843 = vrot.slane %v519, 7
    %v844 = vrot.slane %v843, 2
    %v845 = vrot.slane %v521, 7
    %v846 = vrot.slane %v845, 2
    %v847 = vrot.slane %v529, 7
    %v848 = vrot.slane %v847, 2
    %v849 = vrot.slane %v537, 7
    %v850 = vrot.slane %v849, 2
    %v851 = vrot.slane %v536, 7
    %v852 = vrot.slane %v851, 2
    %v853 = vrot.slane %v538, 7
    %v854 = vrot.slane %v853, 2
    %v855 = vrot.slane %v546, 7
    %v856 = vrot.slane %v855, 2
    %v857 = vrot.slane %v554, 7
    %v858 = vrot.slane %v857, 2
    %v859 = vrot.slane %v553, 7
    %v860 = vrot.slane %v859, 2
    %v861 = vrot.slane %v555, 7
    %v862 = vrot.slane %v861, 2
    %v863 = vrot.slane %v563, 7
    %v864 = vrot.slane %v863, 2
    %v865 = vrot.slane %v571, 7
    %v866 = vrot.slane %v865, 2
    %v867 = vrot.slane %v570, 7
    %v868 = vrot.slane %v867, 2
    %v869 = vrot.slane %v572, 7
    %v870 = vrot.slane %v869, 2
    %v871 = vrot.slane %v580, 7
    %v872 = vrot.slane %v871, 2
    %v873 = vrot.slane %v588, 7
    %v874 = vrot.slane %v873, 2
    %v875 = vrot.slane %v587, 7
    %v876 = vrot.slane %v875, 2
    %v877 = vrot.slane %v589, 7
    %v878 = vrot.slane %v877, 2
    %v879 = vrot.slane %v597, 7
    %v880 = vrot.slane %v879, 2
    %v881 = vrot.slane %v605, 7
    %v882 = vrot.slane %v881, 2
    %v883 = vrot.slane %v604, 7
    %v884 = vrot.slane %v883, 2
    %v885 = vrot.slane %v606, 7
    %v886 = vrot.slane %v885, 2
    %v887 = vrot.slane %v613, 7
    %v888 = vrot.slane %v887, 2
    %v889 = vrot.slane %v621, 7
    %v890 = vrot.slane %v889, 2
    %v891 = vrot.slane %v629, 7
    %v892 = vrot.slane %v891, 2
    %v893 = vrot.slane %v628, 7
    %v894 = vrot.slane %v893, 2
    %v895 = vrot.slane %v630, 7
    %v896 = vrot.slane %v895, 2
    %v897 = vrot.slane %v638, 7
    %v898 = vrot.slane %v897, 2
    %v899 = vrot.slane %v646, 7
    %v900 = vrot.slane %v899, 2
    %v901 = vrot.slane %v645, 7
    %v902 = vrot.slane %v901, 2
    %v903 = vrot.slane %v647, 7
    %v904 = vrot.slane %v903, 2
    %v905 = vrot.slane %v655, 7
    %v906 = vrot.slane %v905, 2
    %v907 = vrot.slane %v663, 7
    %v908 = vrot.slane %v907, 2
    %v909 = vrot.slane %v662, 7
    %v910 = vrot.slane %v909, 2
    %v911 = vrot.slane %v664, 7
    %v912 = vrot.slane %v911, 2
    %v913 = vrot.slane %v672, 7
    %v914 = vrot.slane %v913, 2
    %v915 = vrot.slane %v680, 7
    %v916 = vrot.slane %v915, 2
    %v917 = vrot.slane %v679, 7
    %v918 = vrot.slane %v917, 2
    %v919 = vrot.slane %v681, 7
    %v920 = vrot.slane %v919, 2
    %v921 = vrot.slane %v689, 7
    %v922 = vrot.slane %v921, 2
    %v923 = vrot.slane %v697, 7
    %v924 = vrot.slane %v923, 2
    %v925 = vrot.slane %v696, 7
    %v926 = vrot.slane %v925, 2
    %v927 = vrot.slane %v698, 7
    %v928 = vrot.slane %v927, 2
    %v929 = vrot.slane %v706, 7
    %v930 = vrot.slane %v929, 2
    %v931 = vrot.slane %v714, 7
    %v932 = vrot.slane %v931, 2
    %v933 = vrot.slane %v713, 7
    %v934 = vrot.slane %v933, 2
    %v935 = vrot.slane %v715, 7
    %v936 = vrot.slane %v935, 2
    %v937 = vrot.slane %v723, 7
    %v938 = vrot.slane %v937, 2
    %v939 = vrot.slane %v731, 7
    %v940 = vrot.slane %v939, 2
    %v941 = vrot.slane %v730, 7
    %v942 = vrot.slane %v941, 2
    %v943 = vrot.slane %v732, 7
    %v944 = vrot.slane %v943, 2
    %v945 = vrot.slane %v740, 7
    %v946 = vrot.slane %v945, 2
    %v947 = vrot.slane %v748, 7
    %v948 = vrot.slane %v947, 2
    %v949 = vrot.slane %v747, 7
    %v950 = vrot.slane %v949, 2
    %v951 = vrot.slane %v749, 7
    %v952 = vrot.slane %v951, 2
    %v953 = vrot.slane %v756, 7
    %v954 = vrot.slane %v953, 2
    %v1021 = vmax.f32 %v478, %v824
    %v1022 = vmax.f32 %v486, %v826
    %v1023 = vmax.f32 %v485, %v828
    %v1024 = vmax.f32 %v487, %v830
    %v1025 = vmax.f32 %v495, %v832
    %v1026 = vmax.f32 %v503, %v834
    %v1027 = vmax.f32 %v502, %v836
    %v1028 = vmax.f32 %v504, %v838
    %v1029 = vmax.f32 %v512, %v840
    %v1030 = vmax.f32 %v520, %v842
    %v1031 = vmax.f32 %v519, %v844
    %v1032 = vmax.f32 %v521, %v846
    %v1033 = vmax.f32 %v529, %v848
    %v1034 = vmax.f32 %v537, %v850
    %v1035 = vmax.f32 %v536, %v852
    %v1036 = vmax.f32 %v538, %v854
    %v1037 = vmax.f32 %v546, %v856
    %v1038 = vmax.f32 %v554, %v858
    %v1039 = vmax.f32 %v553, %v860
    %v1040 = vmax.f32 %v555, %v862
    %v1041 = vmax.f32 %v563, %v864
    %v1042 = vmax.f32 %v571, %v866
    %v1043 = vmax.f32 %v570, %v868
    %v1044 = vmax.f32 %v572, %v870
    %v1045 = vmax.f32 %v580, %v872
    %v1046 = vmax.f32 %v588, %v874
    %v1047 = vmax.f32 %v587, %v876
    %v1048 = vmax.f32 %v589, %v878
    %v1049 = vmax.f32 %v597, %v880
    %v1050 = vmax.f32 %v605, %v882
    %v1051 = vmax.f32 %v604, %v884
    %v1052 = vmax.f32 %v606, %v886
    %v1053 = vmax.f32 %v613, %v888
    %v1054 = vmax.f32 %v621, %v890
    %v1055 = vmax.f32 %v629, %v892
    %v1056 = vmax.f32 %v628, %v894
    %v1057 = vmax.f32 %v630, %v896
    %v1058 = vmax.f32 %v638, %v898
    %v1059 = vmax.f32 %v646, %v900
    %v1060 = vmax.f32 %v645, %v902
    %v1061 = vmax.f32 %v647, %v904
    %v1062 = vmax.f32 %v655, %v906
    %v1063 = vmax.f32 %v663, %v908
    %v1064 = vmax.f32 %v662, %v910
    %v1065 = vmax.f32 %v664, %v912
    %v1066 = vmax.f32 %v672, %v914
    %v1067 = vmax.f32 %v680, %v916
    %v1068 = vmax.f32 %v679, %v918
    %v1069 = vmax.f32 %v681, %v920
    %v1070 = vmax.f32 %v689, %v922
    %v1071 = vmax.f32 %v697, %v924
    %v1072 = vmax.f32 %v696, %v926
    %v1073 = vmax.f32 %v698, %v928
    %v1074 = vmax.f32 %v706, %v930
    %v1075 = vmax.f32 %v714, %v932
    %v1076 = vmax.f32 %v713, %v934
    %v1077 = vmax.f32 %v715, %v936
    %v1078 = vmax.f32 %v723, %v938
    %v1079 = vmax.f32 %v731, %v940
    %v1080 = vmax.f32 %v730, %v942
    %v1081 = vmax.f32 %v732, %v944
    %v1082 = vmax.f32 %v740, %v946
    %v1083 = vmax.f32 %v748, %v948
    %v1084 = vmax.f32 %v747, %v950
    %v1085 = vmax.f32 %v749, %v952
    %v1086 = vmax.f32 %v756, %v954
    %v1087 = vmax.f32 %v1021, %v1022
    %v1088 = vmax.f32 %v1022, %v1023
    %v1089 = vmax.f32 %v1023, %v1024
    %v1090 = vmax.f32 %v1024, %v1025
    %v1091 = vmax.f32 %v1025, %v1026
    %v1092 = vmax.f32 %v1026, %v1027
    %v1093 = vmax.f32 %v1027, %v1028
    %v1094 = vmax.f32 %v1028, %v1029
    %v1095 = vmax.f32 %v1029, %v1030
    %v1096 = vmax.f32 %v1030, %v1031
    %v1097 = vmax.f32 %v1031, %v1032
    %v1098 = vmax.f32 %v1032, %v1033
    %v1099 = vmax.f32 %v1033, %v1034
    %v1100 = vmax.f32 %v1034, %v1035
    %v1101 = vmax.f32 %v1035, %v1036
    %v1102 = vmax.f32 %v1036, %v1037
    %v1103 = vmax.f32 %v1037, %v1038
    %v1104 = vmax.f32 %v1038, %v1039
    %v1105 = vmax.f32 %v1039, %v1040
    %v1106 = vmax.f32 %v1040, %v1041
    %v1107 = vmax.f32 %v1041, %v1042
    %v1108 = vmax.f32 %v1042, %v1043
    %v1109 = vmax.f32 %v1043, %v1044
    %v1110 = vmax.f32 %v1044, %v1045
    %v1111 = vmax.f32 %v1045, %v1046
    %v1112 = vmax.f32 %v1046, %v1047
    %v1113 = vmax.f32 %v1047, %v1048
    %v1114 = vmax.f32 %v1048, %v1049
    %v1115 = vmax.f32 %v1049, %v1050
    %v1116 = vmax.f32 %v1050, %v1051
    %v1117 = vmax.f32 %v1051, %v1052
    %v1118 = vmax.f32 %v1052, %v1053
    %v1119 = vmax.f32 %v1054, %v1055
    %v1120 = vmax.f32 %v1055, %v1056
    %v1121 = vmax.f32 %v1056, %v1057
    %v1122 = vmax.f32 %v1057, %v1058
    %v1123 = vmax.f32 %v1058, %v1059
    %v1124 = vmax.f32 %v1059, %v1060
    %v1125 = vmax.f32 %v1060, %v1061
    %v1126 = vmax.f32 %v1061, %v1062
    %v1127 = vmax.f32 %v1062, %v1063
    %v1128 = vmax.f32 %v1063, %v1064
    %v1129 = vmax.f32 %v1064, %v1065
    %v1130 = vmax.f32 %v1065, %v1066
    %v1131 = vmax.f32 %v1066, %v1067
    %v1132 = vmax.f32 %v1067, %v1068
    %v1133 = vmax.f32 %v1068, %v1069
    %v1134 = vmax.f32 %v1069, %v1070
    %v1135 = vmax.f32 %v1070, %v1071
    %v1136 = vmax.f32 %v1071, %v1072
    %v1137 = vmax.f32 %v1072, %v1073
    %v1138 = vmax.f32 %v1073, %v1074
    %v1139 = vmax.f32 %v1074, %v1075
    %v1140 = vmax.f32 %v1075, %v1076
    %v1141 = vmax.f32 %v1076, %v1077
    %v1142 = vmax.f32 %v1077, %v1078
    %v1143 = vmax.f32 %v1078, %v1079
    %v1144 = vmax.f32 %v1079, %v1080
    %v1145 = vmax.f32 %v1080, %v1081
    %v1146 = vmax.f32 %v1081, %v1082
    %v1147 = vmax.f32 %v1082, %v1083
    %v1148 = vmax.f32 %v1083, %v1084
    %v1149 = vmax.f32 %v1084, %v1085
    %v1150 = vmax.f32 %v1085, %v1086
    %v1215 = vlaneseq
    %v1216 = vshrl.u32 %v1215, 7
    %v1217 = vsub.s32 0, %v1216
    %v1218 = vrot.slane %v1087, %v1217
    %v1219 = vlaneseq
    %v1220 = vshrl.u32 %v1219, 7
    %v1221 = vsub.s32 0, %v1220
    %v1222 = vrot.slane %v1088, %v1221
    %v1223 = vlaneseq
    %v1224 = vshrl.u32 %v1223, 7
    %v1225 = vsub.s32 0, %v1224
    %v1226 = vrot.slane %v1089, %v1225
    %v1227 = vlaneseq
    %v1228 = vshrl.u32 %v1227, 7
    %v1229 = vsub.s32 0, %v1228
    %v1230 = vrot.slane %v1090, %v1229
    %v1231 = vlaneseq
    %v1232 = vshrl.u32 %v1231, 7
    %v1233 = vsub.s32 0, %v1232
    %v1234 = vrot.slane %v1091, %v1233
    %v1235 = vlaneseq
    %v1236 = vshrl.u32 %v1235, 7
    %v1237 = vsub.s32 0, %v1236
    %v1238 = vrot.slane %v1092, %v1237
    %v1239 = vlaneseq
    %v1240 = vshrl.u32 %v1239, 7
    %v1241 = vsub.s32 0, %v1240
    %v1242 = vrot.slane %v1093, %v1241
    %v1243 = vlaneseq
    %v1244 = vshrl.u32 %v1243, 7
    %v1245 = vsub.s32 0, %v1244
    %v1246 = vrot.slane %v1094, %v1245
    %v1247 = vlaneseq
    %v1248 = vshrl.u32 %v1247, 7
    %v1249 = vsub.s32 0, %v1248
    %v1250 = vrot.slane %v1095, %v1249
    %v1251 = vlaneseq
    %v1252 = vshrl.u32 %v1251, 7
    %v1253 = vsub.s32 0, %v1252
    %v1254 = vrot.slane %v1096, %v1253
    %v1255 = vlaneseq
    %v1256 = vshrl.u32 %v1255, 7
    %v1257 = vsub.s32 0, %v1256
    %v1258 = vrot.slane %v1097, %v1257
    %v1259 = vlaneseq
    %v1260 = vshrl.u32 %v1259, 7
    %v1261 = vsub.s32 0, %v1260
    %v1262 = vrot.slane %v1098, %v1261
    %v1263 = vlaneseq
    %v1264 = vshrl.u32 %v1263, 7
    %v1265 = vsub.s32 0, %v1264
    %v1266 = vrot.slane %v1099, %v1265
    %v1267 = vlaneseq
    %v1268 = vshrl.u32 %v1267, 7
    %v1269 = vsub.s32 0, %v1268
    %v1270 = vrot.slane %v1100, %v1269
    %v1271 = vlaneseq
    %v1272 = vshrl.u32 %v1271, 7
    %v1273 = vsub.s32 0, %v1272
    %v1274 = vrot.slane %v1101, %v1273
    %v1275 = vlaneseq
    %v1276 = vshrl.u32 %v1275, 7
    %v1277 = vsub.s32 0, %v1276
    %v1278 = vrot.slane %v1102, %v1277
    %v1279 = vlaneseq
    %v1280 = vshrl.u32 %v1279, 7
    %v1281 = vsub.s32 0, %v1280
    %v1282 = vrot.slane %v1103, %v1281
    %v1283 = vlaneseq
    %v1284 = vshrl.u32 %v1283, 7
    %v1285 = vsub.s32 0, %v1284
    %v1286 = vrot.slane %v1104, %v1285
    %v1287 = vlaneseq
    %v1288 = vshrl.u32 %v1287, 7
    %v1289 = vsub.s32 0, %v1288
    %v1290 = vrot.slane %v1105, %v1289
    %v1291 = vlaneseq
    %v1292 = vshrl.u32 %v1291, 7
    %v1293 = vsub.s32 0, %v1292
    %v1294 = vrot.slane %v1106, %v1293
    %v1295 = vlaneseq
    %v1296 = vshrl.u32 %v1295, 7
    %v1297 = vsub.s32 0, %v1296
    %v1298 = vrot.slane %v1107, %v1297
    %v1299 = vlaneseq
    %v1300 = vshrl.u32 %v1299, 7
    %v1301 = vsub.s32 0, %v1300
    %v1302 = vrot.slane %v1108, %v1301
    %v1303 = vlaneseq
    %v1304 = vshrl.u32 %v1303, 7
    %v1305 = vsub.s32 0, %v1304
    %v1306 = vrot.slane %v1109, %v1305
    %v1307 = vlaneseq
    %v1308 = vshrl.u32 %v1307, 7
    %v1309 = vsub.s32 0, %v1308
    %v1310 = vrot.slane %v1110, %v1309
    %v1311 = vlaneseq
    %v1312 = vshrl.u32 %v1311, 7
    %v1313 = vsub.s32 0, %v1312
    %v1314 = vrot.slane %v1111, %v1313
    %v1315 = vlaneseq
    %v1316 = vshrl.u32 %v1315, 7
    %v1317 = vsub.s32 0, %v1316
    %v1318 = vrot.slane %v1112, %v1317
    %v1319 = vlaneseq
    %v1320 = vshrl.u32 %v1319, 7
    %v1321 = vsub.s32 0, %v1320
    %v1322 = vrot.slane %v1113, %v1321
    %v1323 = vlaneseq
    %v1324 = vshrl.u32 %v1323, 7
    %v1325 = vsub.s32 0, %v1324
    %v1326 = vrot.slane %v1114, %v1325
    %v1327 = vlaneseq
    %v1328 = vshrl.u32 %v1327, 7
    %v1329 = vsub.s32 0, %v1328
    %v1330 = vrot.slane %v1115, %v1329
    %v1331 = vlaneseq
    %v1332 = vshrl.u32 %v1331, 7
    %v1333 = vsub.s32 0, %v1332
    %v1334 = vrot.slane %v1116, %v1333
    %v1335 = vlaneseq
    %v1336 = vshrl.u32 %v1335, 7
    %v1337 = vsub.s32 0, %v1336
    %v1338 = vrot.slane %v1117, %v1337
    %v1339 = vlaneseq
    %v1340 = vshrl.u32 %v1339, 7
    %v1341 = vsub.s32 0, %v1340
    %v1342 = vrot.slane %v1118, %v1341
    %v1343 = vlaneseq
    %v1344 = vshrl.u32 %v1343, 7
    %v1345 = vsub.s32 0, %v1344
    %v1346 = vrot.slane %v1119, %v1345
    %v1347 = vlaneseq
    %v1348 = vshrl.u32 %v1347, 7
    %v1349 = vsub.s32 0, %v1348
    %v1350 = vrot.slane %v1120, %v1349
    %v1351 = vlaneseq
    %v1352 = vshrl.u32 %v1351, 7
    %v1353 = vsub.s32 0, %v1352
    %v1354 = vrot.slane %v1121, %v1353
    %v1355 = vlaneseq
    %v1356 = vshrl.u32 %v1355, 7
    %v1357 = vsub.s32 0, %v1356
    %v1358 = vrot.slane %v1122, %v1357
    %v1359 = vlaneseq
    %v1360 = vshrl.u32 %v1359, 7
    %v1361 = vsub.s32 0, %v1360
    %v1362 = vrot.slane %v1123, %v1361
    %v1363 = vlaneseq
    %v1364 = vshrl.u32 %v1363, 7
    %v1365 = vsub.s32 0, %v1364
    %v1366 = vrot.slane %v1124, %v1365
    %v1367 = vlaneseq
    %v1368 = vshrl.u32 %v1367, 7
    %v1369 = vsub.s32 0, %v1368
    %v1370 = vrot.slane %v1125, %v1369
    %v1371 = vlaneseq
    %v1372 = vshrl.u32 %v1371, 7
    %v1373 = vsub.s32 0, %v1372
    %v1374 = vrot.slane %v1126, %v1373
    %v1375 = vlaneseq
    %v1376 = vshrl.u32 %v1375, 7
    %v1377 = vsub.s32 0, %v1376
    %v1378 = vrot.slane %v1127, %v1377
    %v1379 = vlaneseq
    %v1380 = vshrl.u32 %v1379, 7
    %v1381 = vsub.s32 0, %v1380
    %v1382 = vrot.slane %v1128, %v1381
    %v1383 = vlaneseq
    %v1384 = vshrl.u32 %v1383, 7
    %v1385 = vsub.s32 0, %v1384
    %v1386 = vrot.slane %v1129, %v1385
    %v1387 = vlaneseq
    %v1388 = vshrl.u32 %v1387, 7
    %v1389 = vsub.s32 0, %v1388
    %v1390 = vrot.slane %v1130, %v1389
    %v1391 = vlaneseq
    %v1392 = vshrl.u32 %v1391, 7
    %v1393 = vsub.s32 0, %v1392
    %v1394 = vrot.slane %v1131, %v1393
    %v1395 = vlaneseq
    %v1396 = vshrl.u32 %v1395, 7
    %v1397 = vsub.s32 0, %v1396
    %v1398 = vrot.slane %v1132, %v1397
    %v1399 = vlaneseq
    %v1400 = vshrl.u32 %v1399, 7
    %v1401 = vsub.s32 0, %v1400
    %v1402 = vrot.slane %v1133, %v1401
    %v1403 = vlaneseq
    %v1404 = vshrl.u32 %v1403, 7
    %v1405 = vsub.s32 0, %v1404
    %v1406 = vrot.slane %v1134, %v1405
    %v1407 = vlaneseq
    %v1408 = vshrl.u32 %v1407, 7
    %v1409 = vsub.s32 0, %v1408
    %v1410 = vrot.slane %v1135, %v1409
    %v1411 = vlaneseq
    %v1412 = vshrl.u32 %v1411, 7
    %v1413 = vsub.s32 0, %v1412
    %v1414 = vrot.slane %v1136, %v1413
    %v1415 = vlaneseq
    %v1416 = vshrl.u32 %v1415, 7
    %v1417 = vsub.s32 0, %v1416
    %v1418 = vrot.slane %v1137, %v1417
    %v1419 = vlaneseq
    %v1420 = vshrl.u32 %v1419, 7
    %v1421 = vsub.s32 0, %v1420
    %v1422 = vrot.slane %v1138, %v1421
    %v1423 = vlaneseq
    %v1424 = vshrl.u32 %v1423, 7
    %v1425 = vsub.s32 0, %v1424
    %v1426 = vrot.slane %v1139, %v1425
    %v1427 = vlaneseq
    %v1428 = vshrl.u32 %v1427, 7
    %v1429 = vsub.s32 0, %v1428
    %v1430 = vrot.slane %v1140, %v1429
    %v1431 = vlaneseq
    %v1432 = vshrl.u32 %v1431, 7
    %v1433 = vsub.s32 0, %v1432
    %v1434 = vrot.slane %v1141, %v1433
    %v1435 = vlaneseq
    %v1436 = vshrl.u32 %v1435, 7
    %v1437 = vsub.s32 0, %v1436
    %v1438 = vrot.slane %v1142, %v1437
    %v1439 = vlaneseq
    %v1440 = vshrl.u32 %v1439, 7
    %v1441 = vsub.s32 0, %v1440
    %v1442 = vrot.slane %v1143, %v1441
    %v1443 = vlaneseq
    %v1444 = vshrl.u32 %v1443, 7
    %v1445 = vsub.s32 0, %v1444
    %v1446 = vrot.slane %v1144, %v1445
    %v1447 = vlaneseq
    %v1448 = vshrl.u32 %v1447, 7
    %v1449 = vsub.s32 0, %v1448
    %v1450 = vrot.slane %v1145, %v1449
    %v1451 = vlaneseq
    %v1452 = vshrl.u32 %v1451, 7
    %v1453 = vsub.s32 0, %v1452
    %v1454 = vrot.slane %v1146, %v1453
    %v1455 = vlaneseq
    %v1456 = vshrl.u32 %v1455, 7
    %v1457 = vsub.s32 0, %v1456
    %v1458 = vrot.slane %v1147, %v1457
    %v1459 = vlaneseq
    %v1460 = vshrl.u32 %v1459, 7
    %v1461 = vsub.s32 0, %v1460
    %v1462 = vrot.slane %v1148, %v1461
    %v1463 = vlaneseq
    %v1464 = vshrl.u32 %v1463, 7
    %v1465 = vsub.s32 0, %v1464
    %v1466 = vrot.slane %v1149, %v1465
    %v1467 = vlaneseq
    %v1468 = vshrl.u32 %v1467, 7
    %v1469 = vsub.s32 0, %v1468
    %v1470 = vrot.slane %v1150, %v1469
    %vm1471 = vcmask 1042434
    %v1472 = vsel %vm1471, %v1222, %v1218
    %vm1473 = vcmask 1043459
    %v1474 = vsel %vm1473, %v1226, %v1472
    %vm1475 = vcmask 1044484
    %v1476 = vsel %vm1475, %v1230, %v1474
    %vm1477 = vcmask 1045509
    %v1478 = vsel %vm1477, %v1234, %v1476
    %vm1479 = vcmask 1046534
    %v1480 = vsel %vm1479, %v1238, %v1478
    %vm1481 = vcmask 1047559
    %v1482 = vsel %vm1481, %v1242, %v1480
    %vm1483 = vcmask 1041409
    %v1484 = vsel %vm1483, %v1250, %v1246
    %v1485 = vsel %vm1471, %v1254, %v1484
    %v1486 = vsel %vm1473, %v1258, %v1485
    %v1487 = vsel %vm1475, %v1262, %v1486
    %v1488 = vsel %vm1477, %v1266, %v1487
    %v1489 = vsel %vm1479, %v1270, %v1488
    %v1490 = vsel %vm1481, %v1274, %v1489
    %v1491 = vsel %vm1483, %v1282, %v1278
    %v1492 = vsel %vm1471, %v1286, %v1491
    %v1493 = vsel %vm1473, %v1290, %v1492
    %v1494 = vsel %vm1475, %v1294, %v1493
    %v1495 = vsel %vm1477, %v1298, %v1494
    %v1496 = vsel %vm1479, %v1302, %v1495
    %v1497 = vsel %vm1481, %v1306, %v1496
    %v1498 = vsel %vm1483, %v1314, %v1310
    %v1499 = vsel %vm1471, %v1318, %v1498
    %v1500 = vsel %vm1473, %v1322, %v1499
    %v1501 = vsel %vm1475, %v1326, %v1500
    %v1502 = vsel %vm1477, %v1330, %v1501
    %v1503 = vsel %vm1479, %v1334, %v1502
    %v1504 = vsel %vm1481, %v1338, %v1503
    %v1505 = vsel %vm1471, %v1350, %v1346
    %v1506 = vsel %vm1473, %v1354, %v1505
    %v1507 = vsel %vm1475, %v1358, %v1506
    %v1508 = vsel %vm1477, %v1362, %v1507
    %v1509 = vsel %vm1479, %v1366, %v1508
    %v1510 = vsel %vm1481, %v1370, %v1509
    %v1511 = vsel %vm1483, %v1378, %v1374
    %v1512 = vsel %vm1471, %v1382, %v1511
    %v1513 = vsel %vm1473, %v1386, %v1512
    %v1514 = vsel %vm1475, %v1390, %v1513
    %v1515 = vsel %vm1477, %v1394, %v1514
    %v1516 = vsel %vm1479, %v1398, %v1515
    %v1517 = vsel %vm1481, %v1402, %v1516
    %v1518 = vsel %vm1483, %v1410, %v1406
    %v1519 = vsel %vm1471, %v1414, %v1518
    %v1520 = vsel %vm1473, %v1418, %v1519
    %v1521 = vsel %vm1475, %v1422, %v1520
    %v1522 = vsel %vm1477, %v1426, %v1521
    %v1523 = vsel %vm1479, %v1430, %v1522
    %v1524 = vsel %vm1481, %v1434, %v1523
    %v1525 = vsel %vm1483, %v1442, %v1438
    %v1526 = vsel %vm1471, %v1446, %v1525
    %v1527 = vsel %vm1473, %v1450, %v1526
    %v1528 = vsel %vm1475, %v1454, %v1527
    %v1529 = vsel %vm1477, %v1458, %v1528
    %v1530 = vsel %vm1479, %v1462, %v1529
    %v1531 = vsel %vm1481, %v1466, %v1530
    %vm1542 = vcmask 1040384
    %v1543 = vsel %vm1542, 0.0, %v1482
    %v1544 = vsel %vm1542, 0.0, %v1510
    %v1545 = vsel %vm1542, %v1342, 0.0
    %v1546 = vsel %vm1542, %v1470, 0.0
    %vm1551 = vcmask 1046528
    %v1552 = vrot.slane %v1543, 1
    %v1553 = vrot.slane %v1490, 1
    %v1554 = vsel %vm1551, %v1552, %v1553
    %v1555 = vrot.slane %v1497, 1
    %v1556 = vsel %vm1551, %v1553, %v1555
    %v1557 = vrot.slane %v1504, 1
    %v1558 = vsel %vm1551, %v1555, %v1557
    %v1559 = vrot.slane %v1545, 1
    %v1560 = vsel %vm1551, %v1557, %v1559
    %v1561 = vrot.slane %v1544, 1
    %v1562 = vrot.slane %v1517, 1
    %v1563 = vsel %vm1551, %v1561, %v1562
    %v1564 = vrot.slane %v1524, 1
    %v1565 = vsel %vm1551, %v1562, %v1564
    %v1566 = vrot.slane %v1531, 1
    %v1567 = vsel %vm1551, %v1564, %v1566
    %v1568 = vrot.slane %v1546, 1
    %v1569 = vsel %vm1551, %v1566, %v1568
    %1570 = vrot.lane.b32.xlu0 %v1554, 16
    %v1571 = vpop.permute.xlu0 %1570
    %1572 = vrot.lane.b32.xlu0 %v1556, 16
    %v1573 = vpop.permute.xlu0 %1572
    %1574 = vrot.lane.b32.xlu0 %v1558, 16
    %v1575 = vpop.permute.xlu0 %1574
    %1576 = vrot.lane.b32.xlu0 %v1560, 16
    %v1577 = vpop.permute.xlu0 %1576
    %1578 = vrot.lane.b32.xlu0 %v1563, 16
    %v1579 = vpop.permute.xlu0 %1578
    %1580 = vrot.lane.b32.xlu0 %v1565, 16
    %v1581 = vpop.permute.xlu0 %1580
    %1582 = vrot.lane.b32.xlu0 %v1567, 16
    %v1583 = vpop.permute.xlu0 %1582
    %1584 = vrot.lane.b32.xlu0 %v1569, 16
    %v1585 = vpop.permute.xlu0 %1584
    %vm1594 = vcmask 1045504
    %v1595 = vrot.slane %v1543, 2
    %v1596 = vrot.slane %v1490, 2
    %v1597 = vsel %vm1594, %v1595, %v1596
    %v1598 = vrot.slane %v1497, 2
    %v1599 = vsel %vm1594, %v1596, %v1598
    %v1600 = vrot.slane %v1504, 2
    %v1601 = vsel %vm1594, %v1598, %v1600
    %v1602 = vrot.slane %v1545, 2
    %v1603 = vsel %vm1594, %v1600, %v1602
    %v1604 = vrot.slane %v1544, 2
    %v1605 = vrot.slane %v1517, 2
    %v1606 = vsel %vm1594, %v1604, %v1605
    %v1607 = vrot.slane %v1524, 2
    %v1608 = vsel %vm1594, %v1605, %v1607
    %v1609 = vrot.slane %v1531, 2
    %v1610 = vsel %vm1594, %v1607, %v1609
    %v1611 = vrot.slane %v1546, 2
    %v1612 = vsel %vm1594, %v1609, %v1611
    %1613 = vrot.lane.b32.xlu0 %v1597, 32
    %v1614 = vpop.permute.xlu0 %1613
    %1615 = vrot.lane.b32.xlu0 %v1599, 32
    %v1616 = vpop.permute.xlu0 %1615
    %1617 = vrot.lane.b32.xlu0 %v1601, 32
    %v1618 = vpop.permute.xlu0 %1617
    %1619 = vrot.lane.b32.xlu0 %v1603, 32
    %v1620 = vpop.permute.xlu0 %1619
    %1621 = vrot.lane.b32.xlu0 %v1606, 32
    %v1622 = vpop.permute.xlu0 %1621
    %1623 = vrot.lane.b32.xlu0 %v1608, 32
    %v1624 = vpop.permute.xlu0 %1623
    %1625 = vrot.lane.b32.xlu0 %v1610, 32
    %v1626 = vpop.permute.xlu0 %1625
    %1627 = vrot.lane.b32.xlu0 %v1612, 32
    %v1628 = vpop.permute.xlu0 %1627
    %vm1637 = vcmask 130048
    %v1638 = vsel %vm1637, %v1543, %v1571
    %v1639 = vsel %vm1637, %v1490, %v1573
    %v1640 = vsel %vm1637, %v1497, %v1575
    %v1641 = vsel %vm1637, %v1504, %v1577
    %v1642 = vsel %vm1637, %v1544, %v1579
    %v1643 = vsel %vm1637, %v1517, %v1581
    %v1644 = vsel %vm1637, %v1524, %v1583
    %v1645 = vsel %vm1637, %v1531, %v1585
    %vm1646 = vcmask 261120
    %v1647 = vsel %vm1646, %v1638, %v1614
    %v1648 = vsel %vm1646, %v1639, %v1616
    %v1649 = vsel %vm1646, %v1640, %v1618
    %v1650 = vsel %vm1646, %v1641, %v1620
    %v1651 = vsel %vm1646, %v1642, %v1622
    %v1652 = vsel %vm1646, %v1643, %v1624
    %v1653 = vsel %vm1646, %v1644, %v1626
    %v1654 = vsel %vm1646, %v1645, %v1628
    %v1655 = vld [vmem:[%s3] sm:$0xff]
    %v1656 = vld [vmem:[%s3 + $0x8] sm:$0xff]
    %v1657 = vld [vmem:[%s3 + $0x10] sm:$0xff]
    %v1658 = vld [vmem:[%s3 + $0x18] sm:$0xff]
    %v1659 = vld [vmem:[%s3 + $0x20] sm:$0xff]
    %v1660 = vld [vmem:[%s3 + $0x28] sm:$0xff]
    %vm1661 = vcmask 392192
    %v1663 = vsel %vm1661, %v1647, 0
    %v1666 = vsel %vm1661, %v1648, 0
    %v1669 = vsel %vm1661, %v1649, 0
    %v1672 = vsel %vm1661, %v1650, 0
    %v1675 = vsel %vm1661, %v1651, 0
    %v1678 = vsel %vm1661, %v1652, 0
    %v1681 = vsel %vm1661, %v1653, 0
    %v1684 = vsel %vm1661, %v1654, 0
    %1686 = vmatprep.subr.mxu0 0.0
    %1687 = vmatpush1.msra.mxu0 %v1655
    %1688 = vmatprep.subr.mxu0 0.0
    %1689 = vmatpush1.msra.mxu0 %v1656
    %1690 = vmatprep.subr.mxu0 0.0
    %1691 = vmatpush1.msra.mxu0 %v1657
    %1692 = vmatprep.subr.mxu0 0.0
    %1693 = vmatpush1.msra.mxu0 %v1658
    %1694 = vmatprep.subr.mxu0 0.0
    %1695 = vmatpush1.msra.mxu0 %v1659
    %1696 = vmatprep.subr.mxu0 0.0
    %1697 = vmatpush1.msra.mxu0 %v1660
    %1698 = vmatprep.subr.mxu0 0.0
    %1699 = vmatpush1.msra.mxu0 0.0
    %1700 = vmatprep.subr.mxu0 0.0
    %1701 = vmatpush1.msra.mxu0 0.0
    %1702 = vmatprep.subr.mxu0 0.0
    %1703 = vmatpush1.msra.mxu0 0.0
    %1704 = vmatprep.subr.mxu0 0.0
    %1705 = vmatpush1.msra.mxu0 0.0
    %1706 = vmatprep.subr.mxu0 0.0
    %1707 = vmatpush1.msra.mxu0 0.0
    %1708 = vmatprep.subr.mxu0 0.0
    %1709 = vmatpush1.msra.mxu0 0.0
    %1710 = vmatprep.subr.mxu0 0.0
    %1711 = vmatpush1.msra.mxu0 0.0
    %1712 = vmatprep.subr.mxu0 0.0
    %1713 = vmatpush1.msra.mxu0 0.0
    %1714 = vmatprep.subr.mxu0 0.0
    %1715 = vmatpush1.msra.mxu0 0.0
    %1716 = vmatprep.subr.mxu0 0.0
    %1717 = vmatpush1.msra.mxu0 0.0
    %1718 = vmatprep.subr.mxu0 0.0
    %1719 = vmatpush1.msra.mxu0 0.0
    %1720 = vmatprep.subr.mxu0 0.0
    %1721 = vmatpush1.msra.mxu0 0.0
    %1722 = vmatprep.subr.mxu0 0.0
    %1723 = vmatpush1.msra.mxu0 0.0
    %1724 = vmatprep.subr.mxu0 0.0
    %1725 = vmatpush1.msra.mxu0 0.0
    %1726 = vmatprep.subr.mxu0 0.0
    %1727 = vmatpush1.msra.mxu0 0.0
    %1728 = vmatprep.subr.mxu0 0.0
    %1729 = vmatpush1.msra.mxu0 0.0
    %1730 = vmatprep.subr.mxu0 0.0
    %1731 = vmatpush1.msra.mxu0 0.0
    %1732 = vmatprep.subr.mxu0 0.0
    %1733 = vmatpush1.msra.mxu0 0.0
    %1734 = vmatprep.subr.mxu0 0.0
    %1735 = vmatpush1.msra.mxu0 0.0
    %1736 = vmatprep.subr.mxu0 0.0
    %1737 = vmatpush1.msra.mxu0 0.0
    %1738 = vmatprep.subr.mxu0 0.0
    %1739 = vmatpush1.msra.mxu0 0.0
    %1740 = vmatprep.subr.mxu0 0.0
    %1741 = vmatpush1.msra.mxu0 0.0
    %1742 = vmatprep.subr.mxu0 0.0
    %1743 = vmatpush1.msra.mxu0 0.0
    %1744 = vmatprep.subr.mxu0 0.0
    %1745 = vmatpush1.msra.mxu0 0.0
    %1746 = vmatprep.subr.mxu0 0.0
    %1747 = vmatpush1.msra.mxu0 0.0
    %1748 = vmatprep.subr.mxu0 0.0
    %1749 = vmatpush1.msra.mxu0 0.0
    %1750 = vmatprep.mubr.f32.mxu0 0.0
    %1751 = vmatmul.mubr.f32.gmra.mrb[0].mxu0 %v1663
    %v1752 = vpop.f32.mrb[0].mxu0
    %v1753 = vadd.f32 0.0, %v1752
    %v1754 = vpop.f32.mrb[0].mxu0
    %1755 = vmatprep.mubr.f32.mxu0 0.0
    %1756 = vmatmul.mubr.f32.gmra.mrb[0].mxu0 %v1666
    %v1757 = vpop.f32.mrb[0].mxu0
    %v1758 = vadd.f32 0.0, %v1757
    %v1759 = vpop.f32.mrb[0].mxu0
    %1760 = vmatprep.mubr.f32.mxu0 0.0
    %1761 = vmatmul.mubr.f32.gmra.mrb[0].mxu0 %v1669
    %v1762 = vpop.f32.mrb[0].mxu0
    %v1763 = vadd.f32 0.0, %v1762
    %v1764 = vpop.f32.mrb[0].mxu0
    %1765 = vmatprep.mubr.f32.mxu0 0.0
    %1766 = vmatmul.mubr.f32.gmra.mrb[0].mxu0 %v1672
    %v1767 = vpop.f32.mrb[0].mxu0
    %v1768 = vadd.f32 0.0, %v1767
    %v1769 = vpop.f32.mrb[0].mxu0
    %1770 = vmatprep.mubr.f32.mxu0 0.0
    %1771 = vmatmul.mubr.f32.gmra.mrb[0].mxu0 %v1675
    %v1772 = vpop.f32.mrb[0].mxu0
    %v1773 = vadd.f32 0.0, %v1772
    %v1774 = vpop.f32.mrb[0].mxu0
    %1775 = vmatprep.mubr.f32.mxu0 0.0
    %1776 = vmatmul.mubr.f32.gmra.mrb[0].mxu0 %v1678
    %v1777 = vpop.f32.mrb[0].mxu0
    %v1778 = vadd.f32 0.0, %v1777
    %v1779 = vpop.f32.mrb[0].mxu0
    %1780 = vmatprep.mubr.f32.mxu0 0.0
    %1781 = vmatmul.mubr.f32.gmra.mrb[0].mxu0 %v1681
    %v1782 = vpop.f32.mrb[0].mxu0
    %v1783 = vadd.f32 0.0, %v1782
    %v1784 = vpop.f32.mrb[0].mxu0
    %1785 = vmatprep.mubr.f32.mxu0 0.0
    %1786 = vmatmul.mubr.f32.gmra.mrb[0].mxu0 %v1684
    %v1787 = vpop.f32.mrb[0].mxu0
    %v1788 = vadd.f32 0.0, %v1787
    %v1789 = vpop.f32.mrb[0].mxu0
    %1790 = vdwg.mxu0
    %v1791 = vld [vmem:[%s4] sm:$0x1]
    %v1793 = vlaneseq
    %v1794 = vshrl.u32 %v1793, 7
    %v1795 = vsub.s32 0, %v1794
    %v1796 = vrot.slane %v1791, %v1795
    %v1798 = vadd.f32 %v1753, %v1796
    %v1799 = vadd.f32 %v1758, %v1796
    %v1800 = vadd.f32 %v1763, %v1796
    %v1801 = vadd.f32 %v1768, %v1796
    %v1802 = vadd.f32 %v1773, %v1796
    %v1803 = vadd.f32 %v1778, %v1796
    %v1804 = vadd.f32 %v1783, %v1796
    %v1805 = vadd.f32 %v1788, %v1796
    %v1806 = vmax.f32 %v1798, 0.0
    %v1807 = vmax.f32 %v1799, 0.0
    %v1808 = vmax.f32 %v1800, 0.0
    %v1809 = vmax.f32 %v1801, 0.0
    %v1810 = vmax.f32 %v1802, 0.0
    %v1811 = vmax.f32 %v1803, 0.0
    %v1812 = vmax.f32 %v1804, 0.0
    %v1813 = vmax.f32 %v1805, 0.0
    %v1822 = vcombine.high %v1806, %v1806
    %v1824 = vunpack.c.l.s4 1983009808
    %v1825 = vunpack.c.0.s8 %v1824
    %v1826 = vlaneseq
    %v1827 = vshrl.u32 %v1826, 7
    %v1828 = vsub.s32 %v1825, %v1827
    %v1829 = vrot.slane %v1806, %v1828
    %v1831 = vunpack.c.l.s4 1983009808
    %v1832 = vunpack.c.0.s8 %v1831
    %v1833 = vlaneseq
    %v1834 = vshrl.u32 %v1833, 7
    %v1835 = vsub.s32 %v1832, %v1834
    %v1836 = vrot.slane %v1822, %v1835
    %v1837 = vcombine.high %v1829, %v1829
    %v1838 = vcombine.high %v1836, %v1836
    %v1839 = vcombine.high %v1807, %v1807
    %v1841 = vunpack.c.l.s4 1983009808
    %v1842 = vunpack.c.0.s8 %v1841
    %v1843 = vlaneseq
    %v1844 = vshrl.u32 %v1843, 7
    %v1845 = vsub.s32 %v1842, %v1844
    %v1846 = vrot.slane %v1807, %v1845
    %v1848 = vunpack.c.l.s4 1983009808
    %v1849 = vunpack.c.0.s8 %v1848
    %v1850 = vlaneseq
    %v1851 = vshrl.u32 %v1850, 7
    %v1852 = vsub.s32 %v1849, %v1851
    %v1853 = vrot.slane %v1839, %v1852
    %v1854 = vcombine.high %v1846, %v1846
    %v1855 = vcombine.high %v1853, %v1853
    %v1856 = vcombine.high %v1808, %v1808
    %v1858 = vunpack.c.l.s4 1983009808
    %v1859 = vunpack.c.0.s8 %v1858
    %v1860 = vlaneseq
    %v1861 = vshrl.u32 %v1860, 7
    %v1862 = vsub.s32 %v1859, %v1861
    %v1863 = vrot.slane %v1808, %v1862
    %v1865 = vunpack.c.l.s4 1983009808
    %v1866 = vunpack.c.0.s8 %v1865
    %v1867 = vlaneseq
    %v1868 = vshrl.u32 %v1867, 7
    %v1869 = vsub.s32 %v1866, %v1868
    %v1870 = vrot.slane %v1856, %v1869
    %v1871 = vcombine.high %v1863, %v1863
    %v1872 = vcombine.high %v1870, %v1870
    %v1873 = vcombine.high %v1809, %v1809
    %v1875 = vunpack.c.l.s4 1983009808
    %v1876 = vunpack.c.0.s8 %v1875
    %v1877 = vlaneseq
    %v1878 = vshrl.u32 %v1877, 7
    %v1879 = vsub.s32 %v1876, %v1878
    %v1880 = vrot.slane %v1809, %v1879
    %v1882 = vunpack.c.l.s4 1983009808
    %v1883 = vunpack.c.0.s8 %v1882
    %v1884 = vlaneseq
    %v1885 = vshrl.u32 %v1884, 7
    %v1886 = vsub.s32 %v1883, %v1885
    %v1887 = vrot.slane %v1873, %v1886
    %v1888 = vcombine.high %v1880, %v1880
    %v1889 = vcombine.high %v1887, %v1887
    %v1890 = vcombine.high %v1810, %v1810
    %v1892 = vunpack.c.l.s4 1983009808
    %v1893 = vunpack.c.0.s8 %v1892
    %v1894 = vlaneseq
    %v1895 = vshrl.u32 %v1894, 7
    %v1896 = vsub.s32 %v1893, %v1895
    %v1897 = vrot.slane %v1810, %v1896
    %v1899 = vunpack.c.l.s4 1983009808
    %v1900 = vunpack.c.0.s8 %v1899
    %v1901 = vlaneseq
    %v1902 = vshrl.u32 %v1901, 7
    %v1903 = vsub.s32 %v1900, %v1902
    %v1904 = vrot.slane %v1890, %v1903
    %v1905 = vcombine.high %v1897, %v1897
    %v1906 = vcombine.high %v1904, %v1904
    %v1907 = vcombine.high %v1811, %v1811
    %v1909 = vunpack.c.l.s4 1983009808
    %v1910 = vunpack.c.0.s8 %v1909
    %v1911 = vlaneseq
    %v1912 = vshrl.u32 %v1911, 7
    %v1913 = vsub.s32 %v1910, %v1912
    %v1914 = vrot.slane %v1811, %v1913
    %v1916 = vunpack.c.l.s4 1983009808
    %v1917 = vunpack.c.0.s8 %v1916
    %v1918 = vlaneseq
    %v1919 = vshrl.u32 %v1918, 7
    %v1920 = vsub.s32 %v1917, %v1919
    %v1921 = vrot.slane %v1907, %v1920
    %v1922 = vcombine.high %v1914, %v1914
    %v1923 = vcombine.high %v1921, %v1921
    %v1924 = vcombine.high %v1812, %v1812
    %v1926 = vunpack.c.l.s4 1983009808
    %v1927 = vunpack.c.0.s8 %v1926
    %v1928 = vlaneseq
    %v1929 = vshrl.u32 %v1928, 7
    %v1930 = vsub.s32 %v1927, %v1929
    %v1931 = vrot.slane %v1812, %v1930
    %v1933 = vunpack.c.l.s4 1983009808
    %v1934 = vunpack.c.0.s8 %v1933
    %v1935 = vlaneseq
    %v1936 = vshrl.u32 %v1935, 7
    %v1937 = vsub.s32 %v1934, %v1936
    %v1938 = vrot.slane %v1924, %v1937
    %v1939 = vcombine.high %v1931, %v1931
    %v1940 = vcombine.high %v1938, %v1938
    %v1941 = vcombine.high %v1813, %v1813
    %v1943 = vunpack.c.l.s4 1983009808
    %v1944 = vunpack.c.0.s8 %v1943
    %v1945 = vlaneseq
    %v1946 = vshrl.u32 %v1945, 7
    %v1947 = vsub.s32 %v1944, %v1946
    %v1948 = vrot.slane %v1813, %v1947
    %v1950 = vunpack.c.l.s4 1983009808
    %v1951 = vunpack.c.0.s8 %v1950
    %v1952 = vlaneseq
    %v1953 = vshrl.u32 %v1952, 7
    %v1954 = vsub.s32 %v1951, %v1953
    %v1955 = vrot.slane %v1941, %v1954
    %v1956 = vcombine.high %v1948, %v1948
    %v1957 = vcombine.high %v1955, %v1955
    %v1990 = vrot.slane %v1829, 7
    %v1991 = vrot.slane %v1990, 2
    %v1992 = vrot.slane %v1837, 7
    %v1993 = vrot.slane %v1992, 2
    %v1994 = vrot.slane %v1836, 7
    %v1995 = vrot.slane %v1994, 2
    %v1996 = vrot.slane %v1838, 7
    %v1997 = vrot.slane %v1996, 2
    %v1998 = vrot.slane %v1846, 7
    %v1999 = vrot.slane %v1998, 2
    %v2000 = vrot.slane %v1854, 7
    %v2001 = vrot.slane %v2000, 2
    %v2002 = vrot.slane %v1853, 7
    %v2003 = vrot.slane %v2002, 2
    %v2004 = vrot.slane %v1855, 7
    %v2005 = vrot.slane %v2004, 2
    %v2006 = vrot.slane %v1863, 7
    %v2007 = vrot.slane %v2006, 2
    %v2008 = vrot.slane %v1871, 7
    %v2009 = vrot.slane %v2008, 2
    %v2010 = vrot.slane %v1870, 7
    %v2011 = vrot.slane %v2010, 2
    %v2012 = vrot.slane %v1872, 7
    %v2013 = vrot.slane %v2012, 2
    %v2014 = vrot.slane %v1880, 7
    %v2015 = vrot.slane %v2014, 2
    %v2016 = vrot.slane %v1888, 7
    %v2017 = vrot.slane %v2016, 2
    %v2018 = vrot.slane %v1887, 7
    %v2019 = vrot.slane %v2018, 2
    %v2020 = vrot.slane %v1889, 7
    %v2021 = vrot.slane %v2020, 2
    %v2022 = vrot.slane %v1897, 7
    %v2023 = vrot.slane %v2022, 2
    %v2024 = vrot.slane %v1905, 7
    %v2025 = vrot.slane %v2024, 2
    %v2026 = vrot.slane %v1904, 7
    %v2027 = vrot.slane %v2026, 2
    %v2028 = vrot.slane %v1906, 7
    %v2029 = vrot.slane %v2028, 2
    %v2030 = vrot.slane %v1914, 7
    %v2031 = vrot.slane %v2030, 2
    %v2032 = vrot.slane %v1922, 7
    %v2033 = vrot.slane %v2032, 2
    %v2034 = vrot.slane %v1921, 7
    %v2035 = vrot.slane %v2034, 2
    %v2036 = vrot.slane %v1923, 7
    %v2037 = vrot.slane %v2036, 2
    %v2038 = vrot.slane %v1931, 7
    %v2039 = vrot.slane %v2038, 2
    %v2040 = vrot.slane %v1939, 7
    %v2041 = vrot.slane %v2040, 2
    %v2042 = vrot.slane %v1938, 7
    %v2043 = vrot.slane %v2042, 2
    %v2044 = vrot.slane %v1940, 7
    %v2045 = vrot.slane %v2044, 2
    %v2046 = vrot.slane %v1948, 7
    %v2047 = vrot.slane %v2046, 2
    %v2048 = vrot.slane %v1956, 7
    %v2049 = vrot.slane %v2048, 2
    %v2050 = vrot.slane %v1955, 7
    %v2051 = vrot.slane %v2050, 2
    %v2052 = vrot.slane %v1957, 7
    %v2053 = vrot.slane %v2052, 2
    %v2086 = vmax.f32 %v1829, %v1991
    %v2087 = vmax.f32 %v1837, %v1993
    %v2088 = vmax.f32 %v1836, %v1995
    %v2089 = vmax.f32 %v1838, %v1997
    %v2090 = vmax.f32 %v1846, %v1999
    %v2091 = vmax.f32 %v1854, %v2001
    %v2092 = vmax.f32 %v1853, %v2003
    %v2093 = vmax.f32 %v1855, %v2005
    %v2094 = vmax.f32 %v1863, %v2007
    %v2095 = vmax.f32 %v1871, %v2009
    %v2096 = vmax.f32 %v1870, %v2011
    %v2097 = vmax.f32 %v1872, %v2013
    %v2098 = vmax.f32 %v1880, %v2015
    %v2099 = vmax.f32 %v1888, %v2017
    %v2100 = vmax.f32 %v1887, %v2019
    %v2101 = vmax.f32 %v1889, %v2021
    %v2102 = vmax.f32 %v1897, %v2023
    %v2103 = vmax.f32 %v1905, %v2025
    %v2104 = vmax.f32 %v1904, %v2027
    %v2105 = vmax.f32 %v1906, %v2029
    %v2106 = vmax.f32 %v1914, %v2031
    %v2107 = vmax.f32 %v1922, %v2033
    %v2108 = vmax.f32 %v1921, %v2035
    %v2109 = vmax.f32 %v1923, %v2037
    %v2110 = vmax.f32 %v1931, %v2039
    %v2111 = vmax.f32 %v1939, %v2041
    %v2112 = vmax.f32 %v1938, %v2043
    %v2113 = vmax.f32 %v1940, %v2045
    %v2114 = vmax.f32 %v1948, %v2047
    %v2115 = vmax.f32 %v1956, %v2049
    %v2116 = vmax.f32 %v1955, %v2051
    %v2117 = vmax.f32 %v1957, %v2053
    %v2118 = vmax.f32 %v2086, %v2087
    %v2119 = vmax.f32 %v2087, %v2088
    %v2120 = vmax.f32 %v2088, %v2089
    %v2121 = vmax.f32 %v2089, %v2090
    %v2122 = vmax.f32 %v2090, %v2091
    %v2123 = vmax.f32 %v2091, %v2092
    %v2124 = vmax.f32 %v2092, %v2093
    %v2125 = vmax.f32 %v2093, %v2094
    %v2126 = vmax.f32 %v2094, %v2095
    %v2127 = vmax.f32 %v2095, %v2096
    %v2128 = vmax.f32 %v2096, %v2097
    %v2129 = vmax.f32 %v2097, %v2098
    %v2130 = vmax.f32 %v2098, %v2099
    %v2131 = vmax.f32 %v2099, %v2100
    %v2132 = vmax.f32 %v2100, %v2101
    %v2133 = vmax.f32 %v2102, %v2103
    %v2134 = vmax.f32 %v2103, %v2104
    %v2135 = vmax.f32 %v2104, %v2105
    %v2136 = vmax.f32 %v2105, %v2106
    %v2137 = vmax.f32 %v2106, %v2107
    %v2138 = vmax.f32 %v2107, %v2108
    %v2139 = vmax.f32 %v2108, %v2109
    %v2140 = vmax.f32 %v2109, %v2110
    %v2141 = vmax.f32 %v2110, %v2111
    %v2142 = vmax.f32 %v2111, %v2112
    %v2143 = vmax.f32 %v2112, %v2113
    %v2144 = vmax.f32 %v2113, %v2114
    %v2145 = vmax.f32 %v2114, %v2115
    %v2146 = vmax.f32 %v2115, %v2116
    %v2147 = vmax.f32 %v2116, %v2117
    %v2178 = vsel %vm1475, %v2118, %v2118
    %v2179 = vsel %vm1479, %v2118, %v2178
    %v2180 = vrot.slane %v2119, 7
    %v2181 = vsel %vm1483, %v2180, %v2179
    %v2182 = vsel %vm1473, %v2180, %v2181
    %v2183 = vsel %vm1477, %v2180, %v2182
    %v2184 = vsel %vm1481, %v2180, %v2183
    %v2185 = vsel %vm1475, %v2120, %v2120
    %v2186 = vsel %vm1479, %v2120, %v2185
    %v2187 = vrot.slane %v2121, 7
    %v2188 = vsel %vm1483, %v2187, %v2186
    %v2189 = vsel %vm1473, %v2187, %v2188
    %v2190 = vsel %vm1477, %v2187, %v2189
    %v2191 = vsel %vm1481, %v2187, %v2190
    %v2192 = vsel %vm1475, %v2122, %v2122
    %v2193 = vsel %vm1479, %v2122, %v2192
    %v2194 = vrot.slane %v2123, 7
    %v2195 = vsel %vm1483, %v2194, %v2193
    %v2196 = vsel %vm1473, %v2194, %v2195
    %v2197 = vsel %vm1477, %v2194, %v2196
    %v2198 = vsel %vm1481, %v2194, %v2197
    %v2199 = vsel %vm1475, %v2124, %v2124
    %v2200 = vsel %vm1479, %v2124, %v2199
    %v2201 = vrot.slane %v2125, 7
    %v2202 = vsel %vm1483, %v2201, %v2200
    %v2203 = vsel %vm1473, %v2201, %v2202
    %v2204 = vsel %vm1477, %v2201, %v2203
    %v2205 = vsel %vm1481, %v2201, %v2204
    %v2206 = vsel %vm1475, %v2126, %v2126
    %v2207 = vsel %vm1479, %v2126, %v2206
    %v2208 = vrot.slane %v2127, 7
    %v2209 = vsel %vm1483, %v2208, %v2207
    %v2210 = vsel %vm1473, %v2208, %v2209
    %v2211 = vsel %vm1477, %v2208, %v2210
    %v2212 = vsel %vm1481, %v2208, %v2211
    %v2213 = vsel %vm1475, %v2128, %v2128
    %v2214 = vsel %vm1479, %v2128, %v2213
    %v2215 = vrot.slane %v2129, 7
    %v2216 = vsel %vm1483, %v2215, %v2214
    %v2217 = vsel %vm1473, %v2215, %v2216
    %v2218 = vsel %vm1477, %v2215, %v2217
    %v2219 = vsel %vm1481, %v2215, %v2218
    %v2220 = vsel %vm1475, %v2130, %v2130
    %v2221 = vsel %vm1479, %v2130, %v2220
    %v2222 = vrot.slane %v2131, 7
    %v2223 = vsel %vm1483, %v2222, %v2221
    %v2224 = vsel %vm1473, %v2222, %v2223
    %v2225 = vsel %vm1477, %v2222, %v2224
    %v2226 = vsel %vm1481, %v2222, %v2225
    %v2227 = vsel %vm1475, %v2132, %v2132
    %v2228 = vsel %vm1479, %v2132, %v2227
    %v2229 = vsel %vm1475, %v2133, %v2133
    %v2230 = vsel %vm1479, %v2133, %v2229
    %v2231 = vrot.slane %v2134, 7
    %v2232 = vsel %vm1483, %v2231, %v2230
    %v2233 = vsel %vm1473, %v2231, %v2232
    %v2234 = vsel %vm1477, %v2231, %v2233
    %v2235 = vsel %vm1481, %v2231, %v2234
    %v2236 = vsel %vm1475, %v2135, %v2135
    %v2237 = vsel %vm1479, %v2135, %v2236
    %v2238 = vrot.slane %v2136, 7
    %v2239 = vsel %vm1483, %v2238, %v2237
    %v2240 = vsel %vm1473, %v2238, %v2239
    %v2241 = vsel %vm1477, %v2238, %v2240
    %v2242 = vsel %vm1481, %v2238, %v2241
    %v2243 = vsel %vm1475, %v2137, %v2137
    %v2244 = vsel %vm1479, %v2137, %v2243
    %v2245 = vrot.slane %v2138, 7
    %v2246 = vsel %vm1483, %v2245, %v2244
    %v2247 = vsel %vm1473, %v2245, %v2246
    %v2248 = vsel %vm1477, %v2245, %v2247
    %v2249 = vsel %vm1481, %v2245, %v2248
    %v2250 = vsel %vm1475, %v2139, %v2139
    %v2251 = vsel %vm1479, %v2139, %v2250
    %v2252 = vrot.slane %v2140, 7
    %v2253 = vsel %vm1483, %v2252, %v2251
    %v2254 = vsel %vm1473, %v2252, %v2253
    %v2255 = vsel %vm1477, %v2252, %v2254
    %v2256 = vsel %vm1481, %v2252, %v2255
    %v2257 = vsel %vm1475, %v2141, %v2141
    %v2258 = vsel %vm1479, %v2141, %v2257
    %v2259 = vrot.slane %v2142, 7
    %v2260 = vsel %vm1483, %v2259, %v2258
    %v2261 = vsel %vm1473, %v2259, %v2260
    %v2262 = vsel %vm1477, %v2259, %v2261
    %v2263 = vsel %vm1481, %v2259, %v2262
    %v2264 = vsel %vm1475, %v2143, %v2143
    %v2265 = vsel %vm1479, %v2143, %v2264
    %v2266 = vrot.slane %v2144, 7
    %v2267 = vsel %vm1483, %v2266, %v2265
    %v2268 = vsel %vm1473, %v2266, %v2267
    %v2269 = vsel %vm1477, %v2266, %v2268
    %v2270 = vsel %vm1481, %v2266, %v2269
    %v2271 = vsel %vm1475, %v2145, %v2145
    %v2272 = vsel %vm1479, %v2145, %v2271
    %v2273 = vrot.slane %v2146, 7
    %v2274 = vsel %vm1483, %v2273, %v2272
    %v2275 = vsel %vm1473, %v2273, %v2274
    %v2276 = vsel %vm1477, %v2273, %v2275
    %v2277 = vsel %vm1481, %v2273, %v2276
    %v2278 = vsel %vm1475, %v2147, %v2147
    %v2279 = vsel %vm1479, %v2147, %v2278
    %v2296 = vcombine.low %v2184, %v2235
    %v2298 = vunpack.c.l.s4 1934713408
    %v2299 = vunpack.c.0.s8 %v2298
    %v2300 = vlaneseq
    %v2301 = vshrl.u32 %v2300, 7
    %v2302 = vsub.s32 %v2299, %v2301
    %v2303 = vrot.slane %v2296, %v2302
    %v2304 = vcombine.high %v2303, 0.0
    %v2305 = vcombine.low %v2191, %v2242
    %v2307 = vunpack.c.l.s4 1934713408
    %v2308 = vunpack.c.0.s8 %v2307
    %v2309 = vlaneseq
    %v2310 = vshrl.u32 %v2309, 7
    %v2311 = vsub.s32 %v2308, %v2310
    %v2312 = vrot.slane %v2305, %v2311
    %v2313 = vcombine.high %v2312, 0.0
    %v2314 = vcombine.low %v2198, %v2249
    %v2316 = vunpack.c.l.s4 1934713408
    %v2317 = vunpack.c.0.s8 %v2316
    %v2318 = vlaneseq
    %v2319 = vshrl.u32 %v2318, 7
    %v2320 = vsub.s32 %v2317, %v2319
    %v2321 = vrot.slane %v2314, %v2320
    %v2322 = vcombine.high %v2321, 0.0
    %v2323 = vcombine.low %v2205, %v2256
    %v2325 = vunpack.c.l.s4 1934713408
    %v2326 = vunpack.c.0.s8 %v2325
    %v2327 = vlaneseq
    %v2328 = vshrl.u32 %v2327, 7
    %v2329 = vsub.s32 %v2326, %v2328
    %v2330 = vrot.slane %v2323, %v2329
    %v2331 = vcombine.high %v2330, 0.0
    %v2332 = vcombine.low %v2212, %v2263
    %v2334 = vunpack.c.l.s4 1934713408
    %v2335 = vunpack.c.0.s8 %v2334
    %v2336 = vlaneseq
    %v2337 = vshrl.u32 %v2336, 7
    %v2338 = vsub.s32 %v2335, %v2337
    %v2339 = vrot.slane %v2332, %v2338
    %v2340 = vcombine.high %v2339, 0.0
    %v2341 = vcombine.low %v2219, %v2270
    %v2343 = vunpack.c.l.s4 1934713408
    %v2344 = vunpack.c.0.s8 %v2343
    %v2345 = vlaneseq
    %v2346 = vshrl.u32 %v2345, 7
    %v2347 = vsub.s32 %v2344, %v2346
    %v2348 = vrot.slane %v2341, %v2347
    %v2349 = vcombine.high %v2348, 0.0
    %v2350 = vcombine.low %v2226, %v2277
    %v2352 = vunpack.c.l.s4 1934713408
    %v2353 = vunpack.c.0.s8 %v2352
    %v2354 = vlaneseq
    %v2355 = vshrl.u32 %v2354, 7
    %v2356 = vsub.s32 %v2353, %v2355
    %v2357 = vrot.slane %v2350, %v2356
    %v2358 = vcombine.high %v2357, 0.0
    %v2359 = vcombine.low %v2228, %v2279
    %v2361 = vunpack.c.l.s4 1934713408
    %v2362 = vunpack.c.0.s8 %v2361
    %v2363 = vlaneseq
    %v2364 = vshrl.u32 %v2363, 7
    %v2365 = vsub.s32 %v2362, %v2364
    %v2366 = vrot.slane %v2359, %v2365
    %v2369 = vunpack.c.l.s4 1983009808
    %v2370 = vunpack.c.0.s8 %v2369
    %v2371 = vlaneseq
    %v2372 = vshrl.u32 %v2371, 7
    %v2373 = vsub.s32 %v2370, %v2372
    %v2374 = vrot.slane %v2304, %v2373
    %2375 = vrot.lane.b32.xlu0 %v2374, 32
    %v2376 = vpop.permute.xlu0 %2375
    %v2380 = vunpack.c.l.s4 1983009808
    %v2381 = vunpack.c.0.s8 %v2380
    %v2382 = vlaneseq
    %v2383 = vshrl.u32 %v2382, 7
    %v2384 = vsub.s32 %v2381, %v2383
    %v2385 = vrot.slane %v2312, %v2384
    %2386 = vrot.lane.b32.xlu0 %v2385, 64
    %v2387 = vpop.permute.xlu0 %2386
    %v2391 = vunpack.c.l.s4 1983009808
    %v2392 = vunpack.c.0.s8 %v2391
    %v2393 = vlaneseq
    %v2394 = vshrl.u32 %v2393, 7
    %v2395 = vsub.s32 %v2392, %v2394
    %v2396 = vrot.slane %v2313, %v2395
    %2397 = vrot.lane.b32.xlu0 %v2396, 96
    %v2398 = vpop.permute.xlu0 %2397
    %v2402 = vunpack.c.l.s4 1983009808
    %v2403 = vunpack.c.0.s8 %v2402
    %v2404 = vlaneseq
    %v2405 = vshrl.u32 %v2404, 7
    %v2406 = vsub.s32 %v2403, %v2405
    %v2407 = vrot.slane %v2322, %v2406
    %2408 = vrot.lane.b32.xlu0 %v2407, 32
    %v2409 = vpop.permute.xlu0 %2408
    %v2413 = vunpack.c.l.s4 1983009808
    %v2414 = vunpack.c.0.s8 %v2413
    %v2415 = vlaneseq
    %v2416 = vshrl.u32 %v2415, 7
    %v2417 = vsub.s32 %v2414, %v2416
    %v2418 = vrot.slane %v2330, %v2417
    %2419 = vrot.lane.b32.xlu0 %v2418, 64
    %v2420 = vpop.permute.xlu0 %2419
    %v2424 = vunpack.c.l.s4 1983009808
    %v2425 = vunpack.c.0.s8 %v2424
    %v2426 = vlaneseq
    %v2427 = vshrl.u32 %v2426, 7
    %v2428 = vsub.s32 %v2425, %v2427
    %v2429 = vrot.slane %v2331, %v2428
    %2430 = vrot.lane.b32.xlu0 %v2429, 96
    %v2431 = vpop.permute.xlu0 %2430
    %v2435 = vunpack.c.l.s4 1983009808
    %v2436 = vunpack.c.0.s8 %v2435
    %v2437 = vlaneseq
    %v2438 = vshrl.u32 %v2437, 7
    %v2439 = vsub.s32 %v2436, %v2438
    %v2440 = vrot.slane %v2340, %v2439
    %2441 = vrot.lane.b32.xlu0 %v2440, 32
    %v2442 = vpop.permute.xlu0 %2441
    %v2446 = vunpack.c.l.s4 1983009808
    %v2447 = vunpack.c.0.s8 %v2446
    %v2448 = vlaneseq
    %v2449 = vshrl.u32 %v2448, 7
    %v2450 = vsub.s32 %v2447, %v2449
    %v2451 = vrot.slane %v2348, %v2450
    %2452 = vrot.lane.b32.xlu0 %v2451, 64
    %v2453 = vpop.permute.xlu0 %2452
    %v2457 = vunpack.c.l.s4 1983009808
    %v2458 = vunpack.c.0.s8 %v2457
    %v2459 = vlaneseq
    %v2460 = vshrl.u32 %v2459, 7
    %v2461 = vsub.s32 %v2458, %v2460
    %v2462 = vrot.slane %v2349, %v2461
    %2463 = vrot.lane.b32.xlu0 %v2462, 96
    %v2464 = vpop.permute.xlu0 %2463
    %v2468 = vunpack.c.l.s4 1983009808
    %v2469 = vunpack.c.0.s8 %v2468
    %v2470 = vlaneseq
    %v2471 = vshrl.u32 %v2470, 7
    %v2472 = vsub.s32 %v2469, %v2471
    %v2473 = vrot.slane %v2358, %v2472
    %2474 = vrot.lane.b32.xlu0 %v2473, 32
    %v2475 = vpop.permute.xlu0 %2474
    %v2479 = vunpack.c.l.s4 1983009808
    %v2480 = vunpack.c.0.s8 %v2479
    %v2481 = vlaneseq
    %v2482 = vshrl.u32 %v2481, 7
    %v2483 = vsub.s32 %v2480, %v2482
    %v2484 = vrot.slane %v2366, %v2483
    %2485 = vrot.lane.b32.xlu0 %v2484, 64
    %v2486 = vpop.permute.xlu0 %2485
    %v2488 = vsel %vm1646, %v2303, %v2376
    %vm2489 = vcmask 523264
    %v2490 = vsel %vm2489, %v2488, %v2387
    %vm2491 = vcmask 785408
    %v2492 = vsel %vm2491, %v2490, %v2398
    %v2493 = vsel %vm1646, %v2321, %v2409
    %v2494 = vsel %vm2489, %v2493, %v2420
    %v2495 = vsel %vm2491, %v2494, %v2431
    %v2496 = vsel %vm1646, %v2339, %v2442
    %v2497 = vsel %vm2489, %v2496, %v2453
    %v2498 = vsel %vm2491, %v2497, %v2464
    %v2499 = vsel %vm1646, %v2357, %v2475
    %v2500 = vsel %vm2489, %v2499, %v2486
    %v2501 = vld [vmem:[#allocation2] sm:$0xff]
    %v2502 = vld [vmem:[#allocation2 + $0x8] sm:$0xff]
    %v2503 = vld [vmem:[#allocation2 + $0x10] sm:$0xff]
    %v2504 = vld [vmem:[#allocation2 + $0x18] sm:$0xff]
    %v2505 = vld [vmem:[#allocation2 + $0x20] sm:$0xff]
    %v2506 = vld [vmem:[#allocation2 + $0x28] sm:$0xff]
    %v2507 = vld [vmem:[#allocation2 + $0x30] sm:$0xff]
    %v2508 = vld [vmem:[#allocation2 + $0x38] sm:$0xff]
    %v2509 = vld [vmem:[#allocation2 + $0x40] sm:$0xff]
    %v2510 = vld [vmem:[#allocation2 + $0x48] sm:$0xff]
    %v2511 = vld [vmem:[#allocation2 + $0x50] sm:$0xff]
    %v2512 = vld [vmem:[#allocation2 + $0x58] sm:$0xff]
    %v2513 = vld [vmem:[#allocation2 + $0x60] sm:$0xff]
    %v2514 = vld [vmem:[#allocation2 + $0x68] sm:$0xff]
    %v2515 = vld [vmem:[#allocation2 + $0x70] sm:$0xff]
    %v2516 = vld [vmem:[#allocation2 + $0x78] sm:$0xff]
    %v2517 = vld [vmem:[#allocation2 + $0x80] sm:$0xff]
    %v2518 = vld [vmem:[#allocation2 + $0x88] sm:$0xff]
    %v2519 = vld [vmem:[#allocation2 + $0x90] sm:$0xff]
    %v2520 = vld [vmem:[#allocation2 + $0x98] sm:$0xff]
    %v2521 = vld [vmem:[#allocation2 + $0xa0] sm:$0xff]
    %v2522 = vld [vmem:[#allocation2 + $0xa8] sm:$0xff]
    %v2523 = vld [vmem:[#allocation2 + $0xb0] sm:$0xff]
    %v2524 = vld [vmem:[#allocation2 + $0xb8] sm:$0xff]
    %v2525 = vld [vmem:[#allocation2 + $0xc0] sm:$0xff]
    %v2526 = vld [vmem:[#allocation2 + $0xc8] sm:$0xff]
    %v2527 = vld [vmem:[#allocation2 + $0xd0] sm:$0xff]
    %v2528 = vld [vmem:[#allocation2 + $0xd8] sm:$0xff]
    %v2529 = vld [vmem:[#allocation2 + $0xe0] sm:$0xff]
    %v2530 = vld [vmem:[#allocation2 + $0xe8] sm:$0xff]
    %v2531 = vld [vmem:[#allocation2 + $0xf0] sm:$0xff]
    %v2532 = vld [vmem:[#allocation2 + $0xf8] sm:$0xff]
    %v2533 = vld [vmem:[#allocation2 + $0x100] sm:$0xff]
    %v2534 = vld [vmem:[#allocation2 + $0x108] sm:$0xff]
    %v2535 = vld [vmem:[#allocation2 + $0x110] sm:$0xff]
    %v2536 = vld [vmem:[#allocation2 + $0x118] sm:$0xff]
    %v2537 = vld [vmem:[#allocation2 + $0x120] sm:$0xff]
    %v2538 = vld [vmem:[#allocation2 + $0x128] sm:$0xff]
    %v2539 = vld [vmem:[#allocation2 + $0x130] sm:$0xff]
    %v2540 = vld [vmem:[#allocation2 + $0x138] sm:$0xff]
    %v2541 = vld [vmem:[#allocation2 + $0x140] sm:$0xff]
    %v2542 = vld [vmem:[#allocation2 + $0x148] sm:$0xff]
    %v2543 = vld [vmem:[#allocation2 + $0x150] sm:$0xff]
    %v2544 = vld [vmem:[#allocation2 + $0x158] sm:$0xff]
    %v2545 = vld [vmem:[#allocation2 + $0x160] sm:$0xff]
    %v2546 = vld [vmem:[#allocation2 + $0x168] sm:$0xff]
    %v2547 = vld [vmem:[#allocation2 + $0x170] sm:$0xff]
    %v2548 = vld [vmem:[#allocation2 + $0x178] sm:$0xff]
    %v2549 = vld [vmem:[#allocation2 + $0x180] sm:$0xff]
    %v2550 = vld [vmem:[#allocation2 + $0x188] sm:$0xff]
    %v2551 = vld [vmem:[#allocation2 + $0x190] sm:$0xff]
    %v2552 = vld [vmem:[#allocation2 + $0x198] sm:$0xff]
    %v2553 = vld [vmem:[#allocation2 + $0x1a0] sm:$0xff]
    %v2554 = vld [vmem:[#allocation2 + $0x1a8] sm:$0xff]
    %v2555 = vld [vmem:[#allocation2 + $0x1b0] sm:$0xff]
    %v2556 = vld [vmem:[#allocation2 + $0x1b8] sm:$0xff]
    %v2557 = vld [vmem:[#allocation2 + $0x1c0] sm:$0xff]
    %v2558 = vld [vmem:[#allocation2 + $0x1c8] sm:$0xff]
    %v2559 = vld [vmem:[#allocation2 + $0x1d0] sm:$0xff]
    %v2560 = vld [vmem:[#allocation2 + $0x1d8] sm:$0xff]
    %v2561 = vld [vmem:[%s6] sm:$0x1]
    %v2563 = vlaneseq
    %v2564 = vshrl.u32 %v2563, 7
    %v2565 = vsub.s32 0, %v2564
    %v2566 = vrot.slane %v2561, %v2565
    %v2569 = vsel %vm2491, %v2500, 0
    %2571 = vmatprep.subr.mxu0 0.0
    %2572 = vmatpush1.msra.mxu0 %v2501
    %2573 = vmatprep.subr.mxu0 0.0
    %2574 = vmatpush1.msra.mxu0 %v2502
    %2575 = vmatprep.subr.mxu0 0.0
    %2576 = vmatpush1.msra.mxu0 %v2503
    %2577 = vmatprep.subr.mxu0 0.0
    %2578 = vmatpush1.msra.mxu0 %v2504
    %2579 = vmatprep.subr.mxu0 0.0
    %2580 = vmatpush1.msra.mxu0 %v2505
    %2581 = vmatprep.subr.mxu0 0.0
    %2582 = vmatpush1.msra.mxu0 %v2506
    %2583 = vmatprep.subr.mxu0 0.0
    %2584 = vmatpush1.msra.mxu0 %v2507
    %2585 = vmatprep.subr.mxu0 0.0
    %2586 = vmatpush1.msra.mxu0 %v2508
    %2587 = vmatprep.subr.mxu0 0.0
    %2588 = vmatpush1.msra.mxu0 %v2509
    %2589 = vmatprep.subr.mxu0 0.0
    %2590 = vmatpush1.msra.mxu0 %v2510
    %2591 = vmatprep.subr.mxu0 0.0
    %2592 = vmatpush1.msra.mxu0 %v2511
    %2593 = vmatprep.subr.mxu0 0.0
    %2594 = vmatpush1.msra.mxu0 %v2512
    %2595 = vmatprep.subr.mxu0 0.0
    %2596 = vmatpush1.msra.mxu0 %v2513
    %2597 = vmatprep.subr.mxu0 0.0
    %2598 = vmatpush1.msra.mxu0 %v2514
    %2599 = vmatprep.subr.mxu0 0.0
    %2600 = vmatpush1.msra.mxu0 %v2515
    %2601 = vmatprep.subr.mxu0 0.0
    %2602 = vmatpush1.msra.mxu0 %v2516
    %2603 = vmatprep.subr.mxu0 0.0
    %2604 = vmatpush1.msra.mxu0 %v2517
    %2605 = vmatprep.subr.mxu0 0.0
    %2606 = vmatpush1.msra.mxu0 %v2518
    %2607 = vmatprep.subr.mxu0 0.0
    %2608 = vmatpush1.msra.mxu0 %v2519
    %2609 = vmatprep.subr.mxu0 0.0
    %2610 = vmatpush1.msra.mxu0 %v2520
    %2611 = vmatprep.subr.mxu0 0.0
    %2612 = vmatpush1.msra.mxu0 %v2521
    %2613 = vmatprep.subr.mxu0 0.0
    %2614 = vmatpush1.msra.mxu0 %v2522
    %2615 = vmatprep.subr.mxu0 0.0
    %2616 = vmatpush1.msra.mxu0 %v2523
    %2617 = vmatprep.subr.mxu0 0.0
    %2618 = vmatpush1.msra.mxu0 %v2524
    %2619 = vmatprep.subr.mxu0 0.0
    %2620 = vmatpush1.msra.mxu0 %v2525
    %2621 = vmatprep.subr.mxu0 0.0
    %2622 = vmatpush1.msra.mxu0 %v2526
    %2623 = vmatprep.subr.mxu0 0.0
    %2624 = vmatpush1.msra.mxu0 %v2527
    %2625 = vmatprep.subr.mxu0 0.0
    %2626 = vmatpush1.msra.mxu0 %v2528
    %2627 = vmatprep.subr.mxu0 0.0
    %2628 = vmatpush1.msra.mxu0 %v2529
    %2629 = vmatprep.subr.mxu0 0.0
    %2630 = vmatpush1.msra.mxu0 %v2530
    %2631 = vmatprep.subr.mxu0 0.0
    %2632 = vmatpush1.msra.mxu0 %v2531
    %2633 = vmatprep.subr.mxu0 0.0
    %2634 = vmatpush1.msra.mxu0 %v2532
    %2635 = vmatprep.mubr.f32.mxu0 %v2495
    %2636 = vmatmul.mubr.f32.gmra.mrb[0].mxu0 %v2492
    %v2637 = vpop.f32.mrb[0].mxu0
    %v2638 = vadd.f32 %v2566, %v2637
    %v2639 = vpop.f32.mrb[0].mxu0
    %2640 = vdwg.mxu0
    %2641 = vmatprep.subr.mxu0 0.0
    %2642 = vmatpush1.msra.mxu0 %v2533
    %2643 = vmatprep.subr.mxu0 0.0
    %2644 = vmatpush1.msra.mxu0 %v2534
    %2645 = vmatprep.subr.mxu0 0.0
    %2646 = vmatpush1.msra.mxu0 %v2535
    %2647 = vmatprep.subr.mxu0 0.0
    %2648 = vmatpush1.msra.mxu0 %v2536
    %2649 = vmatprep.subr.mxu0 0.0
    %2650 = vmatpush1.msra.mxu0 %v2537
    %2651 = vmatprep.subr.mxu0 0.0
    %2652 = vmatpush1.msra.mxu0 %v2538
    %2653 = vmatprep.subr.mxu0 0.0
    %2654 = vmatpush1.msra.mxu0 %v2539
    %2655 = vmatprep.subr.mxu0 0.0
    %2656 = vmatpush1.msra.mxu0 %v2540
    %2657 = vmatprep.subr.mxu0 0.0
    %2658 = vmatpush1.msra.mxu0 %v2541
    %2659 = vmatprep.subr.mxu0 0.0
    %2660 = vmatpush1.msra.mxu0 %v2542
    %2661 = vmatprep.subr.mxu0 0.0
    %2662 = vmatpush1.msra.mxu0 %v2543
    %2663 = vmatprep.subr.mxu0 0.0
    %2664 = vmatpush1.msra.mxu0 %v2544
    %2665 = vmatprep.subr.mxu0 0.0
    %2666 = vmatpush1.msra.mxu0 %v2545
    %2667 = vmatprep.subr.mxu0 0.0
    %2668 = vmatpush1.msra.mxu0 %v2546
    %2669 = vmatprep.subr.mxu0 0.0
    %2670 = vmatpush1.msra.mxu0 %v2547
    %2671 = vmatprep.subr.mxu0 0.0
    %2672 = vmatpush1.msra.mxu0 %v2548
    %2673 = vmatprep.subr.mxu0 0.0
    %2674 = vmatpush1.msra.mxu0 %v2549
    %2675 = vmatprep.subr.mxu0 0.0
    %2676 = vmatpush1.msra.mxu0 %v2550
    %2677 = vmatprep.subr.mxu0 0.0
    %2678 = vmatpush1.msra.mxu0 %v2551
    %2679 = vmatprep.subr.mxu0 0.0
    %2680 = vmatpush1.msra.mxu0 %v2552
    %2681 = vmatprep.subr.mxu0 0.0
    %2682 = vmatpush1.msra.mxu0 %v2553
    %2683 = vmatprep.subr.mxu0 0.0
    %2684 = vmatpush1.msra.mxu0 %v2554
    %2685 = vmatprep.subr.mxu0 0.0
    %2686 = vmatpush1.msra.mxu0 %v2555
    %2687 = vmatprep.subr.mxu0 0.0
    %2688 = vmatpush1.msra.mxu0 %v2556
    %2689 = vmatprep.subr.mxu0 0.0
    %2690 = vmatpush1.msra.mxu0 %v2557
    %2691 = vmatprep.subr.mxu0 0.0
    %2692 = vmatpush1.msra.mxu0 %v2558
    %2693 = vmatprep.subr.mxu0 0.0
    %2694 = vmatpush1.msra.mxu0 %v2559
    %2695 = vmatprep.subr.mxu0 0.0
    %2696 = vmatpush1.msra.mxu0 %v2560
    %2697 = vmatprep.subr.mxu0 0.0
    %2698 = vmatpush1.msra.mxu0 0.0
    %2699 = vmatprep.subr.mxu0 0.0
    %2700 = vmatpush1.msra.mxu0 0.0
    %2701 = vmatprep.subr.mxu0 0.0
    %2702 = vmatpush1.msra.mxu0 0.0
    %2703 = vmatprep.subr.mxu0 0.0
    %2704 = vmatpush1.msra.mxu0 0.0
    %2705 = vmatprep.mubr.f32.mxu0 %v2569
    %2706 = vmatmul.mubr.f32.gmra.mrb[0].mxu0 %v2498
    %v2707 = vpop.f32.mrb[0].mxu0
    %v2708 = vadd.f32 %v2638, %v2707
    %v2709 = vpop.f32.mrb[0].mxu0
    %2710 = vdwg.mxu0
    %v2711 = vmax.f32 %v2708, 0.0
    %v2712 = vld [vmem:[#allocation5] sm:$0xff]
    %v2713 = vld [vmem:[#allocation5 + $0x8] sm:$0xff]
    %v2714 = vld [vmem:[#allocation5 + $0x10] sm:$0xff]
    %v2715 = vld [vmem:[#allocation5 + $0x18] sm:$0xff]
    %v2716 = vld [vmem:[#allocation5 + $0x20] sm:$0xff]
    %v2717 = vld [vmem:[#allocation5 + $0x28] sm:$0xff]
    %v2718 = vld [vmem:[#allocation5 + $0x30] sm:$0xff]
    %v2719 = vld [vmem:[#allocation5 + $0x38] sm:$0xff]
    %v2720 = vld [vmem:[#allocation5 + $0x40] sm:$0xff]
    %v2721 = vld [vmem:[#allocation5 + $0x48] sm:$0xff]
    %v2722 = vld [vmem:[#allocation5 + $0x50] sm:$0xff]
    %v2723 = vld [vmem:[#allocation5 + $0x58] sm:$0xff]
    %v2724 = vld [vmem:[#allocation5 + $0x60] sm:$0xff]
    %v2725 = vld [vmem:[#allocation5 + $0x68] sm:$0xff]
    %v2726 = vld [vmem:[#allocation5 + $0x70] sm:$0xff]
    %v2727 = vld [vmem:[#allocation5 + $0x78] sm:$0xff]
    %v2728 = vld [vmem:[%s8] sm:$0x1]
    %v2730 = vlaneseq
    %v2731 = vshrl.u32 %v2730, 7
    %v2732 = vsub.s32 0, %v2731
    %v2733 = vrot.slane %v2728, %v2732
    %2735 = vmatprep.subr.mxu0 0.0
    %2736 = vmatpush1.msra.mxu0 %v2712
    %2737 = vmatprep.subr.mxu0 0.0
    %2738 = vmatpush1.msra.mxu0 %v2713
    %2739 = vmatprep.subr.mxu0 0.0
    %2740 = vmatpush1.msra.mxu0 %v2714
    %2741 = vmatprep.subr.mxu0 0.0
    %2742 = vmatpush1.msra.mxu0 %v2715
    %2743 = vmatprep.subr.mxu0 0.0
    %2744 = vmatpush1.msra.mxu0 %v2716
    %2745 = vmatprep.subr.mxu0 0.0
    %2746 = vmatpush1.msra.mxu0 %v2717
    %2747 = vmatprep.subr.mxu0 0.0
    %2748 = vmatpush1.msra.mxu0 %v2718
    %2749 = vmatprep.subr.mxu0 0.0
    %2750 = vmatpush1.msra.mxu0 %v2719
    %2751 = vmatprep.subr.mxu0 0.0
    %2752 = vmatpush1.msra.mxu0 %v2720
    %2753 = vmatprep.subr.mxu0 0.0
    %2754 = vmatpush1.msra.mxu0 %v2721
    %2755 = vmatprep.subr.mxu0 0.0
    %2756 = vmatpush1.msra.mxu0 %v2722
    %2757 = vmatprep.subr.mxu0 0.0
    %2758 = vmatpush1.msra.mxu0 %v2723
    %2759 = vmatprep.subr.mxu0 0.0
    %2760 = vmatpush1.msra.mxu0 %v2724
    %2761 = vmatprep.subr.mxu0 0.0
    %2762 = vmatpush1.msra.mxu0 %v2725
    %2763 = vmatprep.subr.mxu0 0.0
    %2764 = vmatpush1.msra.mxu0 %v2726
    %2765 = vmatprep.subr.mxu0 0.0
    %2766 = vmatpush1.msra.mxu0 %v2727
    %2767 = vmatprep.subr.mxu0 0.0
    %2768 = vmatpush1.msra.mxu0 0.0
    %2769 = vmatprep.subr.mxu0 0.0
    %2770 = vmatpush1.msra.mxu0 0.0
    %2771 = vmatprep.subr.mxu0 0.0
    %2772 = vmatpush1.msra.mxu0 0.0
    %2773 = vmatprep.subr.mxu0 0.0
    %2774 = vmatpush1.msra.mxu0 0.0
    %2775 = vmatprep.subr.mxu0 0.0
    %2776 = vmatpush1.msra.mxu0 0.0
    %2777 = vmatprep.subr.mxu0 0.0
    %2778 = vmatpush1.msra.mxu0 0.0
    %2779 = vmatprep.subr.mxu0 0.0
    %2780 = vmatpush1.msra.mxu0 0.0
    %2781 = vmatprep.subr.mxu0 0.0
    %2782 = vmatpush1.msra.mxu0 0.0
    %2783 = vmatprep.subr.mxu0 0.0
    %2784 = vmatpush1.msra.mxu0 0.0
    %2785 = vmatprep.subr.mxu0 0.0
    %2786 = vmatpush1.msra.mxu0 0.0
    %2787 = vmatprep.subr.mxu0 0.0
    %2788 = vmatpush1.msra.mxu0 0.0
    %2789 = vmatprep.subr.mxu0 0.0
    %2790 = vmatpush1.msra.mxu0 0.0
    %2791 = vmatprep.subr.mxu0 0.0
    %2792 = vmatpush1.msra.mxu0 0.0
    %2793 = vmatprep.subr.mxu0 0.0
    %2794 = vmatpush1.msra.mxu0 0.0
    %2795 = vmatprep.subr.mxu0 0.0
    %2796 = vmatpush1.msra.mxu0 0.0
    %2797 = vmatprep.subr.mxu0 0.0
    %2798 = vmatpush1.msra.mxu0 0.0
    %2799 = vmatprep.mubr.f32.mxu0 0.0
    %2800 = vmatmul.mubr.f32.gmra.mrb[0].mxu0 %v2711
    %v2801 = vpop.f32.mrb[0].mxu0
    %v2802 = vadd.f32 %v2733, %v2801
    %v2803 = vpop.f32.mrb[0].mxu0
    %2804 = vdwg.mxu0
    %v2805 = vmul.f32 %v2802, 0.5
    %v2806 = vtanh.pop %v2805
    %v2807 = vmul.f32 %v2806, 0.5
    %v2808 = vadd.f32 %v2807, 0.5
    %2809 = vst [vmem:[#allocation7] sm:$0x3] %v2808
    // Predicated region
    $region46: #{cnn_forward.1} parent=1 // pred_check
      _
    $region47: #{cnn_forward.1} parent=1 // pred_check_branch
      %2811 = sbr.rel (0) target = $region49
    $region48: #{cnn_forward.1} parent=1 // pred_region
      %s2813 = ssub.s32 32, 32
      %2814 = vsyncadd [#allocation4], %s2813
      %s2816 = sshll.u32 [#allocation7], 4
      %s2817 = int_to_ptr.vmem [resolvable:$true] %s2816
      %2819 = dma.vmem_to_hbm [thread:$0]  %s2817, 32, %s9, [#allocation4]
    $region49: #{cnn_forward.1} parent=1 // pred_fallthru
      _
    // Predicated region
    $region50: #{cnn_forward.1} parent=1 // pred_check
      _
    $region51: #{cnn_forward.1} parent=1 // pred_check_branch
      %2821 = sbr.rel (0) target = $region53
    $region52: #{cnn_forward.1} parent=1 // pred_region
      %2822 = dma.done [#allocation4], 32
    $region53: #{cnn_forward.1} parent=1 // pred_fallthru
      _
    %2823 = vsyncpa [#allocation3], 1
    %2824 = vsyncpa [#allocation6], 1
    %2825 = vsyncpa [#allocation4], 1

</llo_original>
